<compile_context>
chip_gen: v5e
topology: v5e:2x2
jax: 0.10.0
libtpu: 0.0.40
codegen_flags: <defaults>
</compile_context>

<pallas_src>
import functools
import math
import numpy as np
import jax
import jax.numpy as jnp
from jax.experimental import pallas as pl
from jax.experimental.pallas import tpu as pltpu

# ---------------- model hyper-parameters (small, consistent with module) ----
F_FEAT = 128          # fc_features == output_dim
INF_BINS = 64         # inf_edge_features
INF_BINS_PAD = 128    # lane-dense padding of the multiquadric RBF
ATOM_IN = 92          # atom_input_features
ATOM_IN_PAD = 128     # lane-dense padding of atom features
CONV_LAYERS = 3
OUTPUT_FEATURES = 1
RBF_MIN, RBF_MAX = -4.0, 4.0
POTENTIALS = (1.0, 0.5, 0.1)

N_NODES = 16
N_EDGES = 32
N_INF_EDGES = 24
N_GRAPHS = 2
E_TOT = N_EDGES + N_INF_EDGES     # 56


# ---------------------------- fused / pipelined kernel -----------------------
def _potnet_kernel(
    # graph data (constant across grid steps)
    x_ref,        # (N, 128)   zero-padded atom features
    dists_ref,    # (E, 1)     [-0.75/d_local ; sum_i pot_i*attr_i]
    src_ref,      # (E, 1)     int32
    dst_ref,      # (E, 1)     int32
    rows_ref,     # (2, 128)   int32: row0 = dst (padded), row1 = batch (padded)
    emb_w_ref,    # (5, F, F)  atom_w, edge_w, inf_w, fc_w, out_w(pad)
    vec_ref,      # (9, F)     centers_loc, centers_inf, atom_b, edge_b, inf_b,
                  #            inf_bn_s, inf_bn_b, fc_b, out_b(pad)
    # per-layer weights (pipelined: block index == layer index)
    w1ij_ref,     # (1, F, 4F)  [w1i | w1j]
    w1e_ref,      # (1, F, 2F)
    w2_ref,       # (1, 2F, 2F) block-diag, BN scales folded in
    cvec_ref,     # (1, 3, 2F)  b1, b2(folded), bn_shift(pad)
    # output
    o_ref,        # (G, F) lane-dense head slab
    # scratch (persists across grid steps)
    x_sc,         # (N, F) f32
    e_sc,         # (E, F) f32
    ohg_sc,       # (E, 2N) f32 gather one-hot [dst | src]
    ohdt_sc,      # (N, E) f32 scatter-transpose one-hot
    *, gamma_loc, gamma_inf, n_nodes, n_graphs, n_loc_edges, feat):
  f32 = jnp.float32
  n_edges = e_sc.shape[0]
  two_f = 2 * feat

  # ---------------- step 0: embeddings + one-hot construction ----------------
  @pl.when(pl.program_id(0) == 0)
  def _embed():
    centers_loc = vec_ref[0:1, :]
    centers_inf = vec_ref[1:2, :]
    atom_b = vec_ref[2:3, :]
    edge_b = vec_ref[3:4, :]
    inf_b = vec_ref[4:5, :]
    inf_bn_s = vec_ref[5:6, :]
    inf_bn_b = vec_ref[6:7, :]

    # atom embedding: Linear(92->F) (zero-padded columns/rows -> exact)
    x_sc[...] = (jnp.dot(x_ref[...], emb_w_ref[0], preferred_element_type=f32)
                 + atom_b)

    # local edges: gaussian RBF (on -0.75/d precomputed) -> Linear -> SiLU
    d = dists_ref[0:n_loc_edges, :]
    base = gamma_loc * (d - centers_loc)
    rbf = jnp.exp(-(base * base))
    ef = jnp.dot(rbf, emb_w_ref[1], preferred_element_type=f32) + edge_b
    ef = ef * jax.nn.sigmoid(ef)                                   # SiLU

    # infinite edges: multiquadric RBF -> Linear -> softplus -> eval BN
    inf_d = dists_ref[n_loc_edges:n_edges, :]
    ibase = gamma_inf * (inf_d - centers_inf)
    irbf = jnp.sqrt(1.0 + ibase * ibase)
    ife = jnp.dot(irbf, emb_w_ref[2], preferred_element_type=f32) + inf_b
    ife = jnp.logaddexp(ife, 0.0)                                  # softplus
    ife = ife * inf_bn_s + inf_bn_b

    e_sc[...] = jnp.concatenate([ef, ife], axis=0)                 # (E, F)

    # fused gather one-hot (E, 2N): cols [0,N) match dst, cols [N,2N) match src
    iota_g = jax.lax.broadcasted_iota(jnp.int32, (n_edges, 2 * n_nodes), 1)
    ohg_sc[...] = ((iota_g == dst_ref[...])
                   | (iota_g == (src_ref[...] + n_nodes))).astype(f32)
    # scatter-add transpose (N, E), built directly (no XLU transpose)
    iota_s = jax.lax.broadcasted_iota(jnp.int32, (n_nodes, n_edges), 0)
    ohdt_sc[...] = (iota_s == rows_ref[0:1, 0:n_edges]).astype(f32)

  # ---------------- PotNetConv layer (every grid step) ------------------------
  cvec = cvec_ref[0]                           # (3, 2F)
  b1 = cvec[0:1, :]
  b2 = cvec[1:2, :]                            # BN scale/shift already folded
  bn_shift = cvec[2:3, 0:feat]                 # output-BN shift

  x = x_sc[...]
  e_all = e_sc[...]
  # node pre-projection for both endpoints in ONE matmul: (N,F)x(F,4F)
  p = jnp.dot(x, w1ij_ref[0], preferred_element_type=f32)
  p_stack = jnp.concatenate([p[:, 0:two_f], p[:, two_f:]], axis=0)  # (2N, 2F)
  # per-edge first layer of BOTH fused message MLPs
  pe = jnp.dot(e_all, w1e_ref[0], preferred_element_type=f32) + b1  # (E, 2F)
  h1 = jnp.dot(ohg_sc[...], p_stack, preferred_element_type=f32) + pe
  h1 = h1 * jax.nn.sigmoid(h1)                                      # SiLU
  # second layers: single block-diagonal (2F,2F) matmul (BN scales folded)
  h2 = jnp.dot(h1, w2_ref[0], preferred_element_type=f32) + b2      # (E, 2F)
  score = jax.nn.sigmoid(h2[:, 0:feat])        # sigmoid(bn_interaction(full(z)))
  msg = score * h2[:, feat:]                   # * (bn-scale-folded) nonlinear(z)
  agg = jnp.dot(ohdt_sc[...], msg, preferred_element_type=f32)      # (N, F)
  x_sc[...] = jnp.maximum(x + agg + bn_shift, 0.0)                  # relu(x+bn(out))

  # ---------------- last step: global mean pool + fc head ---------------------
  @pl.when(pl.program_id(0) == pl.num_programs(0) - 1)
  def _readout():
    fc_b = vec_ref[7:8, :]
    out_b = vec_ref[8:9, :]
    batch_row = rows_ref[1:2, 0:n_nodes]
    iota_b = jax.lax.broadcasted_iota(jnp.int32, (n_graphs, n_nodes), 0)
    oh_b = (iota_b == batch_row).astype(f32)                        # (G, N)
    counts = jnp.sum(oh_b, axis=1, keepdims=True)
    pooled = (jnp.dot(oh_b, x_sc[...], preferred_element_type=f32)
              / jnp.maximum(counts, 1.0))
    feats = jnp.dot(pooled, emb_w_ref[3], preferred_element_type=f32) + fc_b
    feats = jnp.logaddexp(feats, 0.0) - math.log(2.0)               # ShiftedSoftplus
    # Dropout(p=0.1) is identity in eval mode.
    o_ref[...] = jnp.dot(feats, emb_w_ref[4], preferred_element_type=f32) + out_b


# ---------------------------- wrapper -----------------------------------------
def potnet_forward(x, edge_index, edge_attr, inf_edge_index, inf_edge_attr,
                   batch, params):
  n = x.shape[0]
  e_loc = edge_attr.shape[0]
  e_tot = e_loc + inf_edge_attr.shape[0]
  f = F_FEAT

  # concat local + infinite edge indices (euclidean=False, transformer=False)
  src = jnp.concatenate([edge_index[0], inf_edge_index[0]]).astype(jnp.int32)
  dst = jnp.concatenate([edge_index[1], inf_edge_index[1]]).astype(jnp.int32)

  # hoisted per-edge scalars (fused for free by XLA outside the kernel)
  pots = jnp.asarray(POTENTIALS, jnp.float32)
  d_loc = -0.75 / edge_attr.reshape(e_loc, 1)
  d_inf = jnp.sum(inf_edge_attr * pots[None, :], axis=1, keepdims=True)
  dists = jnp.concatenate([d_loc, d_inf], axis=0)                    # (E, 1)

  # lane-dense atom features (92 -> 128 zero pad)
  x_pad = jnp.pad(x, ((0, 0), (0, ATOM_IN_PAD - x.shape[1])))

  # consolidated int32 row slab: row0 = dst (scatter-T), row1 = batch (pool)
  rows = jnp.full((2, 128), -1, jnp.int32)
  rows = rows.at[0, :e_tot].set(dst)
  rows = rows.at[1, :n].set(batch.astype(jnp.int32))

  gamma_loc = (F_FEAT - 1) / (RBF_MAX - RBF_MIN)
  gamma_inf = (INF_BINS - 1) / (RBF_MAX - RBF_MIN)

  kernel = functools.partial(
      _potnet_kernel,
      gamma_loc=float(gamma_loc), gamma_inf=float(gamma_inf),
      n_nodes=n, n_graphs=N_GRAPHS, n_loc_edges=e_loc, feat=f)

  grid_spec = pltpu.PrefetchScalarGridSpec(
      num_scalar_prefetch=0,
      grid=(CONV_LAYERS,),
      in_specs=[
          pl.BlockSpec((n, ATOM_IN_PAD), lambda l: (0, 0)),
          pl.BlockSpec((e_tot, 1), lambda l: (0, 0)),
          pl.BlockSpec((e_tot, 1), lambda l: (0, 0)),
          pl.BlockSpec((e_tot, 1), lambda l: (0, 0)),
          pl.BlockSpec((2, 128), lambda l: (0, 0)),
          pl.BlockSpec((5, f, f), lambda l: (0, 0, 0)),
          pl.BlockSpec((9, f), lambda l: (0, 0)),
          # per-layer weights: pipelined (double-buffered) over the layer axis
          pl.BlockSpec((1, f, 4 * f), lambda l: (l, 0, 0)),
          pl.BlockSpec((1, f, 2 * f), lambda l: (l, 0, 0)),
          pl.BlockSpec((1, 2 * f, 2 * f), lambda l: (l, 0, 0)),
          pl.BlockSpec((1, 3, 2 * f), lambda l: (l, 0, 0)),
      ],
      out_specs=pl.BlockSpec((N_GRAPHS, f), lambda l: (0, 0)),
      scratch_shapes=[
          pltpu.VMEM((n, f), jnp.float32),          # node features
          pltpu.VMEM((e_tot, f), jnp.float32),      # edge features
          pltpu.VMEM((e_tot, 2 * n), jnp.float32),  # fused gather one-hot
          pltpu.VMEM((n, e_tot), jnp.float32),      # scatter-transpose one-hot
      ])

  out = pl.pallas_call(
      kernel,
      out_shape=jax.ShapeDtypeStruct((N_GRAPHS, f), jnp.float32),
      grid_spec=grid_spec,
      compiler_params=pltpu.CompilerParams(
          dimension_semantics=("arbitrary",)),
  )(x_pad, dists, src.reshape(e_tot, 1), dst.reshape(e_tot, 1), rows,
    params["emb_w"], params["vec"],
    params["w1ij"], params["w1e"], params["w2"], params["cvec"])
  return out[:, 0]


# ---------------------------- parameter construction --------------------------
def linear_params(key, fan_in, fan_out):
  k1, k2 = jax.random.split(key)
  w = jax.random.normal(k1, (fan_in, fan_out), jnp.float32) / np.sqrt(fan_in)
  b = 0.01 * jax.random.normal(k2, (1, fan_out), jnp.float32)
  return w, b


def bn_fold(key, f):
  # eval-mode BatchNorm1d folded into per-feature scale/shift
  k1, k2, k3, k4 = jax.random.split(key, 4)
  weight = 1.0 + 0.1 * jax.random.normal(k1, (1, f), jnp.float32)
  bias = 0.1 * jax.random.normal(k2, (1, f), jnp.float32)
  rmean = 0.05 * jax.random.normal(k3, (1, f), jnp.float32)
  rvar = 0.9 + 0.2 * jax.random.uniform(k4, (1, f), jnp.float32)
  scale = weight / jnp.sqrt(rvar + 1e-5)
  shift = bias - rmean * scale
  return scale, shift


def build_params(keys):
  f = F_FEAT
  # ---- embedding / readout linears ----
  atom_w, atom_b = linear_params(next(keys), ATOM_IN, f)
  atom_w = jnp.pad(atom_w, ((0, ATOM_IN_PAD - ATOM_IN), (0, 0)))   # aligned K
  edge_w, edge_b = linear_params(next(keys), f, f)
  inf_w, inf_b = linear_params(next(keys), INF_BINS, f)
  inf_w = jnp.pad(inf_w, ((0, INF_BINS_PAD - INF_BINS), (0, 0)))   # aligned K
  inf_bn_s, inf_bn_b = bn_fold(next(keys), f)
  fc_w, fc_b = linear_params(next(keys), f, f)
  out_w, out_b = linear_params(next(keys), f, OUTPUT_FEATURES)
  out_w = jnp.pad(out_w, ((0, 0), (0, f - OUTPUT_FEATURES)))       # lane-dense head
  out_b = jnp.pad(out_b, ((0, 0), (0, f - OUTPUT_FEATURES)))

  # RBF centers (buffers of RBFExpansion), inf centers zero-weight padded
  centers_loc = jnp.linspace(RBF_MIN, RBF_MAX, f, dtype=jnp.float32).reshape(1, f)
  centers_inf = jnp.linspace(RBF_MIN, RBF_MAX, INF_BINS, dtype=jnp.float32)
  centers_inf = jnp.pad(centers_inf, (0, INF_BINS_PAD - INF_BINS),
                        constant_values=RBF_MAX).reshape(1, INF_BINS_PAD)

  params = {
      "emb_w": jnp.stack([atom_w, edge_w, inf_w, fc_w, out_w], axis=0),
      "vec": jnp.concatenate(
          [centers_loc, centers_inf, atom_b, edge_b, inf_b,
           inf_bn_s, inf_bn_b, fc_b, out_b], axis=0),               # (9, F)
  }

  # ---- PotNetConv layers: fuse the two MLPs and fold BN scales ----
  w1ij_l, w1e_l, w2_l, cvec_l = [], [], [], []
  zero = jnp.zeros((f, f), jnp.float32)
  for _ in range(CONV_LAYERS):
    wf1, bf1 = linear_params(next(keys), 3 * f, f)   # nonlinear_full layer 1
    wf2, bf2 = linear_params(next(keys), f, f)       # nonlinear_full layer 2
    w1_, b1_ = linear_params(next(keys), 3 * f, f)   # nonlinear layer 1
    w2_, b2_ = linear_params(next(keys), f, f)       # nonlinear layer 2
    s_i, sh_i = bn_fold(next(keys), f)               # bn_interaction (eval)
    s_o, sh_o = bn_fold(next(keys), f)               # bn (eval)

    w1c = jnp.concatenate([wf1, w1_], axis=1)        # (3F, 2F) both first layers
    w1i, w1j, w1e = w1c[:f], w1c[f:2 * f], w1c[2 * f:]
    w1ij_l.append(jnp.concatenate([w1i, w1j], axis=1))              # (F, 4F)
    w1e_l.append(w1e)                                               # (F, 2F)
    b1 = jnp.concatenate([bf1, b1_], axis=1)                        # (1, 2F)

    # block-diagonal second layers with BN scales folded in (exact):
    #   score branch: bn_i(h1f@wf2+bf2) = h1f@(wf2*s_i) + (bf2*s_i + sh_i)
    #   msg branch * bn scale: (h1n@w2_+b2_)*s_o = h1n@(w2_*s_o) + b2_*s_o
    w2blk = jnp.concatenate(
        [jnp.concatenate([wf2 * s_i, zero], axis=1),
         jnp.concatenate([zero, w2_ * s_o], axis=1)], axis=0)       # (2F, 2F)
    b2 = jnp.concatenate([bf2 * s_i + sh_i, b2_ * s_o], axis=1)     # (1, 2F)
    bn_shift = jnp.pad(sh_o, ((0, 0), (0, f)))                      # (1, 2F)

    w2_l.append(w2blk)
    cvec_l.append(jnp.concatenate([b1, b2, bn_shift], axis=0))      # (3, 2F)

  params.update(
      w1ij=jnp.stack(w1ij_l), w1e=jnp.stack(w1e_l),
      w2=jnp.stack(w2_l), cvec=jnp.stack(cvec_l))
  return params


# ---------------------------- main ---------------------------------------------
if __name__ == "__main__":
  keys = iter(jax.random.split(jax.random.PRNGKey(0), 64))

  # deterministic example graph
  x = jax.random.normal(next(keys), (N_NODES, ATOM_IN), jnp.float32)
  edge_index = jax.random.randint(next(keys), (2, N_EDGES), 0, N_NODES)
  edge_attr = jax.random.uniform(next(keys), (N_EDGES,), jnp.float32, 0.5, 3.0)
  inf_edge_index = jax.random.randint(next(keys), (2, N_INF_EDGES), 0, N_NODES)
  inf_edge_attr = jax.random.uniform(next(keys), (N_INF_EDGES, len(POTENTIALS)),
                                     jnp.float32, 0.1, 2.0)
  batch = jnp.repeat(jnp.arange(N_GRAPHS, dtype=jnp.int32),
                     N_NODES // N_GRAPHS)

  params = build_params(keys)

  out = potnet_forward(x, edge_index, edge_attr, inf_edge_index, inf_edge_attr,
                       batch, params)
  out = jax.block_until_ready(out)
  assert out.shape == (N_GRAPHS,) and bool(jnp.all(jnp.isfinite(out)))
  print("KERNEL_OK")
</pallas_src>

<mosaic_0001>
module attributes {stable_mosaic.version = 11 : i64} {
  func.func @_potnet_kernel(%arg0: i32, %arg1: memref<16x128xf32, #tpu.memory_space<vmem>>, %arg2: memref<56x1xf32, #tpu.memory_space<vmem>>, %arg3: memref<56x1xi32, #tpu.memory_space<vmem>>, %arg4: memref<56x1xi32, #tpu.memory_space<vmem>>, %arg5: memref<2x128xi32, #tpu.memory_space<vmem>>, %arg6: memref<5x128x128xf32, #tpu.memory_space<vmem>>, %arg7: memref<9x128xf32, #tpu.memory_space<vmem>>, %arg8: memref<1x128x512xf32, #tpu.memory_space<vmem>>, %arg9: memref<1x128x256xf32, #tpu.memory_space<vmem>>, %arg10: memref<1x256x256xf32, #tpu.memory_space<vmem>>, %arg11: memref<1x3x256xf32, #tpu.memory_space<vmem>>, %arg12: memref<2x128xf32, #tpu.memory_space<vmem>>, %arg13: memref<16x128xf32, #tpu.memory_space<vmem>>, %arg14: memref<56x128xf32, #tpu.memory_space<vmem>>, %arg15: memref<56x32xf32, #tpu.memory_space<vmem>>, %arg16: memref<16x56xf32, #tpu.memory_space<vmem>>) attributes {dimension_semantics = [#tpu.dimension_semantics<arbitrary>], iteration_bounds = array<i64: 3>, scalar_prefetch = 0 : i64, scratch_operands = 4 : i64, tpu.core_type = #tpu.core_type<tc>, window_params = [{pipeline_mode = #tpu.pipeline_mode<synchronous>, transform_indices = @transform_0, window_bounds = array<i64: 16, 128>}, {pipeline_mode = #tpu.pipeline_mode<synchronous>, transform_indices = @transform_1, window_bounds = array<i64: 56, 1>}, {pipeline_mode = #tpu.pipeline_mode<synchronous>, transform_indices = @transform_2, window_bounds = array<i64: 56, 1>}, {pipeline_mode = #tpu.pipeline_mode<synchronous>, transform_indices = @transform_3, window_bounds = array<i64: 56, 1>}, {pipeline_mode = #tpu.pipeline_mode<synchronous>, transform_indices = @transform_4, window_bounds = array<i64: 2, 128>}, {pipeline_mode = #tpu.pipeline_mode<synchronous>, transform_indices = @transform_5, window_bounds = array<i64: 5, 128, 128>}, {pipeline_mode = #tpu.pipeline_mode<synchronous>, transform_indices = @transform_6, window_bounds = array<i64: 9, 128>}, {transform_indices = @transform_7, window_bounds = array<i64: 1, 128, 512>}, {transform_indices = @transform_8, window_bounds = array<i64: 1, 128, 256>}, {transform_indices = @transform_9, window_bounds = array<i64: 1, 256, 256>}, {transform_indices = @transform_10, window_bounds = array<i64: 1, 3, 256>}, {pipeline_mode = #tpu.pipeline_mode<synchronous>, transform_indices = @transform_11, window_bounds = array<i64: 2, 128>}]} {
    %c0_i32 = arith.constant 0 : i32
    %0 = arith.cmpi eq, %arg0, %c0_i32 : i32
    %1 = arith.extui %0 : i1 to i32
    %c0_i32_0 = arith.constant 0 : i32
    %2 = arith.cmpi ne, %1, %c0_i32_0 : i32
    scf.if %2 {
      %c0_30 = arith.constant 0 : index
      %c0_31 = arith.constant 0 : index
      %54 = vector.load %arg7[%c0_30, %c0_31] : memref<9x128xf32, #tpu.memory_space<vmem>>, vector<1x128xf32>
      %c1 = arith.constant 1 : index
      %c0_32 = arith.constant 0 : index
      %55 = vector.load %arg7[%c1, %c0_32] : memref<9x128xf32, #tpu.memory_space<vmem>>, vector<1x128xf32>
      %c2 = arith.constant 2 : index
      %c0_33 = arith.constant 0 : index
      %56 = vector.load %arg7[%c2, %c0_33] : memref<9x128xf32, #tpu.memory_space<vmem>>, vector<1x128xf32>
      %c3 = arith.constant 3 : index
      %c0_34 = arith.constant 0 : index
      %57 = vector.load %arg7[%c3, %c0_34] : memref<9x128xf32, #tpu.memory_space<vmem>>, vector<1x128xf32>
      %c4 = arith.constant 4 : index
      %c0_35 = arith.constant 0 : index
      %58 = vector.load %arg7[%c4, %c0_35] : memref<9x128xf32, #tpu.memory_space<vmem>>, vector<1x128xf32>
      %c5 = arith.constant 5 : index
      %c0_36 = arith.constant 0 : index
      %59 = vector.load %arg7[%c5, %c0_36] : memref<9x128xf32, #tpu.memory_space<vmem>>, vector<1x128xf32>
      %c6 = arith.constant 6 : index
      %c0_37 = arith.constant 0 : index
      %60 = vector.load %arg7[%c6, %c0_37] : memref<9x128xf32, #tpu.memory_space<vmem>>, vector<1x128xf32>
      %c0_38 = arith.constant 0 : index
      %c0_39 = arith.constant 0 : index
      %61 = vector.load %arg1[%c0_38, %c0_39] : memref<16x128xf32, #tpu.memory_space<vmem>>, vector<16x128xf32>
      %c0_40 = arith.constant 0 : index
      %c0_41 = arith.constant 0 : index
      %c0_42 = arith.constant 0 : index
      %62 = vector.load %arg6[%c0_40, %c0_41, %c0_42] : memref<5x128x128xf32, #tpu.memory_space<vmem>>, vector<1x128x128xf32>
      %63 = vector.shape_cast %62 : vector<1x128x128xf32> to vector<128x128xf32>
      %cst_43 = arith.constant dense<0.000000e+00> : vector<16x128xf32>
      %64 = tpu.matmul %61, %63, %cst_43 {dimension_numbers = #tpu.dot_dimension_numbers<[1], [0], [0], [1], [0, 0, 1, 1], [], []>} : vector<16x128xf32>, vector<128x128xf32>, vector<16x128xf32> -> vector<16x128xf32>
      %65 = vector.broadcast %56 : vector<1x128xf32> to vector<16x128xf32>
      %66 = arith.addf %64, %65 : vector<16x128xf32>
      %c0_44 = arith.constant 0 : index
      %c0_45 = arith.constant 0 : index
      %67 = vector.load %arg13[%c0_44, %c0_45] : memref<16x128xf32, #tpu.memory_space<vmem>>, vector<16x128xf32>
      tpu.vector_store %arg13[%c0_44, %c0_45], %66 {strides = array<i32>} : memref<16x128xf32, #tpu.memory_space<vmem>>, vector<16x128xf32>,
      %c0_46 = arith.constant 0 : index
      %c0_47 = arith.constant 0 : index
      %68 = vector.load %arg2[%c0_46, %c0_47] : memref<56x1xf32, #tpu.memory_space<vmem>>, vector<32x1xf32>
      %69 = vector.broadcast %68 : vector<32x1xf32> to vector<32x128xf32>
      %70 = vector.broadcast %54 : vector<1x128xf32> to vector<32x128xf32>
      %71 = arith.subf %69, %70 : vector<32x128xf32>
      %cst_48 = arith.constant 1.587500e+01 : f32
      %72 = vector.broadcast %cst_48 : f32 to vector<32x128xf32>
      %73 = arith.mulf %72, %71 : vector<32x128xf32>
      %74 = arith.mulf %73, %73 : vector<32x128xf32>
      %cst_49 = arith.constant 0.000000e+00 : f32
      %75 = vector.broadcast %cst_49 : f32 to vector<32x128xf32>
      %76 = arith.subf %75, %74 : vector<32x128xf32>
      %77 = math.exp %76 : vector<32x128xf32>
      %c1_50 = arith.constant 1 : index
      %c0_51 = arith.constant 0 : index
      %c0_52 = arith.constant 0 : index
      %78 = vector.load %arg6[%c1_50, %c0_51, %c0_52] : memref<5x128x128xf32, #tpu.memory_space<vmem>>, vector<1x128x128xf32>
      %79 = vector.shape_cast %78 : vector<1x128x128xf32> to vector<128x128xf32>
      %cst_53 = arith.constant dense<0.000000e+00> : vector<32x128xf32>
      %80 = tpu.matmul %77, %79, %cst_53 {dimension_numbers = #tpu.dot_dimension_numbers<[1], [0], [0], [1], [0, 0, 1, 1], [], []>} : vector<32x128xf32>, vector<128x128xf32>, vector<32x128xf32> -> vector<32x128xf32>
      %81 = vector.broadcast %57 : vector<1x128xf32> to vector<32x128xf32>
      %82 = arith.addf %80, %81 : vector<32x128xf32>
      %83 = arith.negf %82 : vector<32x128xf32>
      %84 = math.exp %83 : vector<32x128xf32>
      %cst_54 = arith.constant 1.000000e+00 : f32
      %85 = vector.broadcast %cst_54 : f32 to vector<32x128xf32>
      %86 = arith.addf %85, %84 : vector<32x128xf32>
      %87 = arith.divf %85, %86 : vector<32x128xf32>
      %88 = arith.mulf %82, %87 : vector<32x128xf32>
      %c32 = arith.constant 32 : index
      %c0_55 = arith.constant 0 : index
      %89 = vector.load %arg2[%c32, %c0_55] : memref<56x1xf32, #tpu.memory_space<vmem>>, vector<24x1xf32>
      %90 = vector.broadcast %89 : vector<24x1xf32> to vector<24x128xf32>
      %91 = vector.broadcast %55 : vector<1x128xf32> to vector<24x128xf32>
      %92 = arith.subf %90, %91 : vector<24x128xf32>
      %cst_56 = arith.constant 7.875000e+00 : f32
      %93 = vector.broadcast %cst_56 : f32 to vector<24x128xf32>
      %94 = arith.mulf %93, %92 : vector<24x128xf32>
      %95 = arith.mulf %94, %94 : vector<24x128xf32>
      %cst_57 = arith.constant 1.000000e+00 : f32
      %96 = vector.broadcast %cst_57 : f32 to vector<24x128xf32>
      %97 = arith.addf %96, %95 : vector<24x128xf32>
      %98 = math.sqrt %97 : vector<24x128xf32>
      %c2_58 = arith.constant 2 : index
      %c0_59 = arith.constant 0 : index
      %c0_60 = arith.constant 0 : index
      %99 = vector.load %arg6[%c2_58, %c0_59, %c0_60] : memref<5x128x128xf32, #tpu.memory_space<vmem>>, vector<1x128x128xf32>
      %100 = vector.shape_cast %99 : vector<1x128x128xf32> to vector<128x128xf32>
      %cst_61 = arith.constant dense<0.000000e+00> : vector<24x128xf32>
      %101 = tpu.matmul %98, %100, %cst_61 {dimension_numbers = #tpu.dot_dimension_numbers<[1], [0], [0], [1], [0, 0, 1, 1], [], []>} : vector<24x128xf32>, vector<128x128xf32>, vector<24x128xf32> -> vector<24x128xf32>
      %102 = vector.broadcast %58 : vector<1x128xf32> to vector<24x128xf32>
      %103 = arith.addf %101, %102 : vector<24x128xf32>
      %cst_62 = arith.constant 0.000000e+00 : f32
      %104 = vector.broadcast %cst_62 : f32 to vector<24x128xf32>
      %105 = arith.maximumf %103, %104 : vector<24x128xf32>
      %106 = vector.broadcast %cst_62 : f32 to vector<24x128xf32>
      %107 = arith.subf %103, %106 : vector<24x128xf32>
      %108 = arith.cmpf one, %107, %107 : vector<24x128xf32>
      %109 = vector.broadcast %cst_62 : f32 to vector<24x128xf32>
      %110 = arith.addf %103, %109 : vector<24x128xf32>
      %111 = math.absf %107 : vector<24x128xf32>
      %cst_63 = arith.constant 0.000000e+00 : f32
      %112 = vector.broadcast %cst_63 : f32 to vector<24x128xf32>
      %113 = arith.subf %112, %111 : vector<24x128xf32>
      %114 = math.exp %113 : vector<24x128xf32>
      %115 = math.log1p %114 : vector<24x128xf32>
      %116 = arith.addf %105, %115 : vector<24x128xf32>
      %117 = arith.select %108, %110, %116 : vector<24x128xi1>, vector<24x128xf32>
      %118 = vector.broadcast %59 : vector<1x128xf32> to vector<24x128xf32>
      %119 = arith.mulf %117, %118 : vector<24x128xf32>
      %120 = vector.broadcast %60 : vector<1x128xf32> to vector<24x128xf32>
      %121 = arith.addf %119, %120 : vector<24x128xf32>
      %122 = tpu.concatenate %88, %121 in 0 : vector<32x128xf32>, vector<24x128xf32> -> vector<56x128xf32>
      %c0_64 = arith.constant 0 : index
      %c0_65 = arith.constant 0 : index
      %123 = vector.load %arg14[%c0_64, %c0_65] : memref<56x128xf32, #tpu.memory_space<vmem>>, vector<56x128xf32>
      tpu.vector_store %arg14[%c0_64, %c0_65], %122 {strides = array<i32>} : memref<56x128xf32, #tpu.memory_space<vmem>>, vector<56x128xf32>,
      %124 = tpu.iota {dimensions = array<i32: 1>} : vector<56x32xi32>
      %c0_66 = arith.constant 0 : index
      %c0_67 = arith.constant 0 : index
      %125 = vector.load %arg4[%c0_66, %c0_67] : memref<56x1xi32, #tpu.memory_space<vmem>>, vector<56x1xi32>
      %126 = vector.broadcast %125 : vector<56x1xi32> to vector<56x32xi32>
      %127 = arith.cmpi eq, %124, %126 : vector<56x32xi32>
      %c0_68 = arith.constant 0 : index
      %c0_69 = arith.constant 0 : index
      %128 = vector.load %arg3[%c0_68, %c0_69] : memref<56x1xi32, #tpu.memory_space<vmem>>, vector<56x1xi32>
      %c16_i32 = arith.constant 16 : i32
      %129 = vector.broadcast %c16_i32 : i32 to vector<56x1xi32>
      %130 = arith.addi %128, %129 : vector<56x1xi32>
      %131 = vector.broadcast %130 : vector<56x1xi32> to vector<56x32xi32>
      %132 = arith.cmpi eq, %124, %131 : vector<56x32xi32>
      %133 = arith.ori %127, %132 : vector<56x32xi1>
      %134 = arith.extui %133 : vector<56x32xi1> to vector<56x32xi32>
      %135 = arith.sitofp %134 : vector<56x32xi32> to vector<56x32xf32>
      %c0_70 = arith.constant 0 : index
      %c0_71 = arith.constant 0 : index
      %136 = vector.load %arg15[%c0_70, %c0_71] : memref<56x32xf32, #tpu.memory_space<vmem>>, vector<56x32xf32>
      tpu.vector_store %arg15[%c0_70, %c0_71], %135 {strides = array<i32>} : memref<56x32xf32, #tpu.memory_space<vmem>>, vector<56x32xf32>,
      %137 = tpu.iota {dimensions = array<i32: 0>} : vector<16x56xi32>
      %c0_72 = arith.constant 0 : index
      %c0_73 = arith.constant 0 : index
      %138 = vector.load %arg5[%c0_72, %c0_73] : memref<2x128xi32, #tpu.memory_space<vmem>>, vector<1x56xi32>
      %139 = vector.broadcast %138 : vector<1x56xi32> to vector<16x56xi32>
      %140 = arith.cmpi eq, %137, %139 : vector<16x56xi32>
      %141 = arith.extui %140 : vector<16x56xi1> to vector<16x56xi32>
      %142 = arith.sitofp %141 : vector<16x56xi32> to vector<16x56xf32>
      %c0_74 = arith.constant 0 : index
      %c0_75 = arith.constant 0 : index
      %143 = vector.load %arg16[%c0_74, %c0_75] : memref<16x56xf32, #tpu.memory_space<vmem>>, vector<16x56xf32>
      tpu.vector_store %arg16[%c0_74, %c0_75], %142 {strides = array<i32>} : memref<16x56xf32, #tpu.memory_space<vmem>>, vector<16x56xf32>,
    } else {
    }
    %c0 = arith.constant 0 : index
    %c0_1 = arith.constant 0 : index
    %c0_2 = arith.constant 0 : index
    %3 = vector.load %arg11[%c0, %c0_1, %c0_2] : memref<1x3x256xf32, #tpu.memory_space<vmem>>, vector<1x3x256xf32>
    %4 = vector.shape_cast %3 : vector<1x3x256xf32> to vector<3x256xf32>
    %5 = vector.extract_strided_slice %4 {offsets = [0, 0], sizes = [1, 256], strides = [1, 1]} : vector<3x256xf32> to vector<1x256xf32>
    %6 = vector.extract_strided_slice %4 {offsets = [1, 0], sizes = [1, 256], strides = [1, 1]} : vector<3x256xf32> to vector<1x256xf32>
    %7 = vector.extract_strided_slice %4 {offsets = [2, 0], sizes = [1, 128], strides = [1, 1]} : vector<3x256xf32> to vector<1x128xf32>
    %c0_3 = arith.constant 0 : index
    %c0_4 = arith.constant 0 : index
    %8 = vector.load %arg13[%c0_3, %c0_4] : memref<16x128xf32, #tpu.memory_space<vmem>>, vector<16x128xf32>
    %c0_5 = arith.constant 0 : index
    %c0_6 = arith.constant 0 : index
    %9 = vector.load %arg14[%c0_5, %c0_6] : memref<56x128xf32, #tpu.memory_space<vmem>>, vector<56x128xf32>
    %c0_7 = arith.constant 0 : index
    %c0_8 = arith.constant 0 : index
    %c0_9 = arith.constant 0 : index
    %10 = vector.load %arg8[%c0_7, %c0_8, %c0_9] : memref<1x128x512xf32, #tpu.memory_space<vmem>>, vector<1x128x512xf32>
    %11 = vector.shape_cast %10 : vector<1x128x512xf32> to vector<128x512xf32>
    %cst = arith.constant dense<0.000000e+00> : vector<16x512xf32>
    %12 = tpu.matmul %8, %11, %cst {dimension_numbers = #tpu.dot_dimension_numbers<[1], [0], [0], [1], [0, 0, 1, 1], [], []>} : vector<16x128xf32>, vector<128x512xf32>, vector<16x512xf32> -> vector<16x512xf32>
    %13 = vector.extract_strided_slice %12 {offsets = [0, 0], sizes = [16, 256], strides = [1, 1]} : vector<16x512xf32> to vector<16x256xf32>
    %14 = vector.extract_strided_slice %12 {offsets = [0, 256], sizes = [16, 256], strides = [1, 1]} : vector<16x512xf32> to vector<16x256xf32>
    %15 = tpu.concatenate %13, %14 in 0 : vector<16x256xf32>, vector<16x256xf32> -> vector<32x256xf32>
    %c0_10 = arith.constant 0 : index
    %c0_11 = arith.constant 0 : index
    %c0_12 = arith.constant 0 : index
    %16 = vector.load %arg9[%c0_10, %c0_11, %c0_12] : memref<1x128x256xf32, #tpu.memory_space<vmem>>, vector<1x128x256xf32>
    %17 = vector.shape_cast %16 : vector<1x128x256xf32> to vector<128x256xf32>
    %cst_13 = arith.constant dense<0.000000e+00> : vector<56x256xf32>
    %18 = tpu.matmul %9, %17, %cst_13 {dimension_numbers = #tpu.dot_dimension_numbers<[1], [0], [0], [1], [0, 0, 1, 1], [], []>} : vector<56x128xf32>, vector<128x256xf32>, vector<56x256xf32> -> vector<56x256xf32>
    %19 = vector.broadcast %5 : vector<1x256xf32> to vector<56x256xf32>
    %20 = arith.addf %18, %19 : vector<56x256xf32>
    %c0_14 = arith.constant 0 : index
    %c0_15 = arith.constant 0 : index
    %21 = vector.load %arg15[%c0_14, %c0_15] : memref<56x32xf32, #tpu.memory_space<vmem>>, vector<56x32xf32>
    %cst_16 = arith.constant dense<0.000000e+00> : vector<56x256xf32>
    %22 = tpu.matmul %21, %15, %cst_16 {dimension_numbers = #tpu.dot_dimension_numbers<[1], [0], [0], [1], [0, 0, 1, 1], [], []>} : vector<56x32xf32>, vector<32x256xf32>, vector<56x256xf32> -> vector<56x256xf32>
    %23 = arith.addf %22, %20 : vector<56x256xf32>
    %24 = arith.negf %23 : vector<56x256xf32>
    %25 = math.exp %24 : vector<56x256xf32>
    %cst_17 = arith.constant 1.000000e+00 : f32
    %26 = vector.broadcast %cst_17 : f32 to vector<56x256xf32>
    %27 = arith.addf %26, %25 : vector<56x256xf32>
    %28 = arith.divf %26, %27 : vector<56x256xf32>
    %29 = arith.mulf %23, %28 : vector<56x256xf32>
    %c0_18 = arith.constant 0 : index
    %c0_19 = arith.constant 0 : index
    %c0_20 = arith.constant 0 : index
    %30 = vector.load %arg10[%c0_18, %c0_19, %c0_20] : memref<1x256x256xf32, #tpu.memory_space<vmem>>, vector<1x256x256xf32>
    %31 = vector.shape_cast %30 : vector<1x256x256xf32> to vector<256x256xf32>
    %cst_21 = arith.constant dense<0.000000e+00> : vector<56x256xf32>
    %32 = tpu.matmul %29, %31, %cst_21 {dimension_numbers = #tpu.dot_dimension_numbers<[1], [0], [0], [1], [0, 0, 1, 1], [], []>} : vector<56x256xf32>, vector<256x256xf32>, vector<56x256xf32> -> vector<56x256xf32>
    %33 = vector.broadcast %6 : vector<1x256xf32> to vector<56x256xf32>
    %34 = arith.addf %32, %33 : vector<56x256xf32>
    %35 = vector.extract_strided_slice %34 {offsets = [0, 0], sizes = [56, 128], strides = [1, 1]} : vector<56x256xf32> to vector<56x128xf32>
    %36 = arith.negf %35 : vector<56x128xf32>
    %37 = math.exp %36 : vector<56x128xf32>
    %cst_22 = arith.constant 1.000000e+00 : f32
    %38 = vector.broadcast %cst_22 : f32 to vector<56x128xf32>
    %39 = arith.addf %38, %37 : vector<56x128xf32>
    %40 = arith.divf %38, %39 : vector<56x128xf32>
    %41 = vector.extract_strided_slice %34 {offsets = [0, 128], sizes = [56, 128], strides = [1, 1]} : vector<56x256xf32> to vector<56x128xf32>
    %42 = arith.mulf %40, %41 : vector<56x128xf32>
    %c0_23 = arith.constant 0 : index
    %c0_24 = arith.constant 0 : index
    %43 = vector.load %arg16[%c0_23, %c0_24] : memref<16x56xf32, #tpu.memory_space<vmem>>, vector<16x56xf32>
    %cst_25 = arith.constant dense<0.000000e+00> : vector<16x128xf32>
    %44 = tpu.matmul %43, %42, %cst_25 {dimension_numbers = #tpu.dot_dimension_numbers<[1], [0], [0], [1], [0, 0, 1, 1], [], []>} : vector<16x56xf32>, vector<56x128xf32>, vector<16x128xf32> -> vector<16x128xf32>
    %45 = arith.addf %8, %44 : vector<16x128xf32>
    %46 = vector.broadcast %7 : vector<1x128xf32> to vector<16x128xf32>
    %47 = arith.addf %45, %46 : vector<16x128xf32>
    %cst_26 = arith.constant 0.000000e+00 : f32
    %48 = vector.broadcast %cst_26 : f32 to vector<16x128xf32>
    %49 = arith.maximumf %47, %48 : vector<16x128xf32>
    %c0_27 = arith.constant 0 : index
    %c0_28 = arith.constant 0 : index
    %50 = vector.load %arg13[%c0_27, %c0_28] : memref<16x128xf32, #tpu.memory_space<vmem>>, vector<16x128xf32>
    tpu.vector_store %arg13[%c0_27, %c0_28], %49 {strides = array<i32>} : memref<16x128xf32, #tpu.memory_space<vmem>>, vector<16x128xf32>,
    %c2_i32 = arith.constant 2 : i32
    %51 = arith.cmpi eq, %arg0, %c2_i32 : i32
    %52 = arith.extui %51 : i1 to i32
    %c0_i32_29 = arith.constant 0 : i32
    %53 = arith.cmpi ne, %52, %c0_i32_29 : i32
    scf.if %53 {
      %c7 = arith.constant 7 : index
      %c0_30 = arith.constant 0 : index
      %54 = vector.load %arg7[%c7, %c0_30] : memref<9x128xf32, #tpu.memory_space<vmem>>, vector<1x128xf32>
      %c8 = arith.constant 8 : index
      %c0_31 = arith.constant 0 : index
      %55 = vector.load %arg7[%c8, %c0_31] : memref<9x128xf32, #tpu.memory_space<vmem>>, vector<1x128xf32>
      %c1 = arith.constant 1 : index
      %c0_32 = arith.constant 0 : index
      %56 = vector.load %arg5[%c1, %c0_32] : memref<2x128xi32, #tpu.memory_space<vmem>>, vector<1x16xi32>
      %57 = tpu.iota {dimensions = array<i32: 0>} : vector<2x16xi32>
      %58 = vector.broadcast %56 : vector<1x16xi32> to vector<2x16xi32>
      %59 = arith.cmpi eq, %57, %58 : vector<2x16xi32>
      %60 = arith.extui %59 : vector<2x16xi1> to vector<2x16xi32>
      %61 = arith.sitofp %60 : vector<2x16xi32> to vector<2x16xf32>
      %cst_33 = arith.constant dense<0.000000e+00> : vector<2xf32>
      %62 = vector.multi_reduction <add>, %61, %cst_33 [1] : vector<2x16xf32> to vector<2xf32>
      %63 = vector.shape_cast %62 : vector<2xf32> to vector<2x1xf32>
      %c0_34 = arith.constant 0 : index
      %c0_35 = arith.constant 0 : index
      %64 = vector.load %arg13[%c0_34, %c0_35] : memref<16x128xf32, #tpu.memory_space<vmem>>, vector<16x128xf32>
      %cst_36 = arith.constant dense<0.000000e+00> : vector<2x128xf32>
      %65 = tpu.matmul %61, %64, %cst_36 {dimension_numbers = #tpu.dot_dimension_numbers<[1], [0], [0], [1], [0, 0, 1, 1], [], []>} : vector<2x16xf32>, vector<16x128xf32>, vector<2x128xf32> -> vector<2x128xf32>
      %cst_37 = arith.constant 1.000000e+00 : f32
      %66 = vector.broadcast %cst_37 : f32 to vector<2x1xf32>
      %67 = arith.maximumf %63, %66 : vector<2x1xf32>
      %68 = vector.broadcast %67 : vector<2x1xf32> to vector<2x128xf32>
      %69 = arith.divf %65, %68 : vector<2x128xf32>
      %c3 = arith.constant 3 : index
      %c0_38 = arith.constant 0 : index
      %c0_39 = arith.constant 0 : index
      %70 = vector.load %arg6[%c3, %c0_38, %c0_39] : memref<5x128x128xf32, #tpu.memory_space<vmem>>, vector<1x128x128xf32>
      %71 = vector.shape_cast %70 : vector<1x128x128xf32> to vector<128x128xf32>
      %cst_40 = arith.constant dense<0.000000e+00> : vector<2x128xf32>
      %72 = tpu.matmul %69, %71, %cst_40 {dimension_numbers = #tpu.dot_dimension_numbers<[1], [0], [0], [1], [0, 0, 1, 1], [], []>} : vector<2x128xf32>, vector<128x128xf32>, vector<2x128xf32> -> vector<2x128xf32>
      %73 = vector.broadcast %54 : vector<1x128xf32> to vector<2x128xf32>
      %74 = arith.addf %72, %73 : vector<2x128xf32>
      %cst_41 = arith.constant 0.000000e+00 : f32
      %75 = vector.broadcast %cst_41 : f32 to vector<2x128xf32>
      %76 = arith.maximumf %74, %75 : vector<2x128xf32>
      %77 = vector.broadcast %cst_41 : f32 to vector<2x128xf32>
      %78 = arith.subf %74, %77 : vector<2x128xf32>
      %79 = arith.cmpf one, %78, %78 : vector<2x128xf32>
      %80 = vector.broadcast %cst_41 : f32 to vector<2x128xf32>
      %81 = arith.addf %74, %80 : vector<2x128xf32>
      %82 = math.absf %78 : vector<2x128xf32>
      %cst_42 = arith.constant 0.000000e+00 : f32
      %83 = vector.broadcast %cst_42 : f32 to vector<2x128xf32>
      %84 = arith.subf %83, %82 : vector<2x128xf32>
      %85 = math.exp %84 : vector<2x128xf32>
      %86 = math.log1p %85 : vector<2x128xf32>
      %87 = arith.addf %76, %86 : vector<2x128xf32>
      %88 = arith.select %79, %81, %87 : vector<2x128xi1>, vector<2x128xf32>
      %cst_43 = arith.constant 0.693147182 : f32
      %89 = vector.broadcast %cst_43 : f32 to vector<2x128xf32>
      %90 = arith.subf %88, %89 : vector<2x128xf32>
      %c4 = arith.constant 4 : index
      %c0_44 = arith.constant 0 : index
      %c0_45 = arith.constant 0 : index
      %91 = vector.load %arg6[%c4, %c0_44, %c0_45] : memref<5x128x128xf32, #tpu.memory_space<vmem>>, vector<1x128x128xf32>
      %92 = vector.shape_cast %91 : vector<1x128x128xf32> to vector<128x128xf32>
      %cst_46 = arith.constant dense<0.000000e+00> : vector<2x128xf32>
      %93 = tpu.matmul %90, %92, %cst_46 {dimension_numbers = #tpu.dot_dimension_numbers<[1], [0], [0], [1], [0, 0, 1, 1], [], []>} : vector<2x128xf32>, vector<128x128xf32>, vector<2x128xf32> -> vector<2x128xf32>
      %94 = vector.broadcast %55 : vector<1x128xf32> to vector<2x128xf32>
      %95 = arith.addf %93, %94 : vector<2x128xf32>
      %c0_47 = arith.constant 0 : index
      %c0_48 = arith.constant 0 : index
      %96 = vector.load %arg12[%c0_47, %c0_48] : memref<2x128xf32, #tpu.memory_space<vmem>>, vector<2x128xf32>
      tpu.vector_store %arg12[%c0_47, %c0_48], %95 {strides = array<i32>} : memref<2x128xf32, #tpu.memory_space<vmem>>, vector<2x128xf32>,
    } else {
    }
    return
  }
  func.func @transform_0(%arg0: i32) -> (i32, i32) {
    %c0_i32 = arith.constant 0 : i32
    %c0_i32_0 = arith.constant 0 : i32
    %c0_i32_1 = arith.constant 0 : i32
    return %c0_i32, %c0_i32_0 : i32, i32
  }
  func.func @transform_1(%arg0: i32) -> (i32, i32) {
    %c0_i32 = arith.constant 0 : i32
    %c0_i32_0 = arith.constant 0 : i32
    %c0_i32_1 = arith.constant 0 : i32
    return %c0_i32, %c0_i32_0 : i32, i32
  }
  func.func @transform_2(%arg0: i32) -> (i32, i32) {
    %c0_i32 = arith.constant 0 : i32
    %c0_i32_0 = arith.constant 0 : i32
    %c0_i32_1 = arith.constant 0 : i32
    return %c0_i32, %c0_i32_0 : i32, i32
  }
  func.func @transform_3(%arg0: i32) -> (i32, i32) {
    %c0_i32 = arith.constant 0 : i32
    %c0_i32_0 = arith.constant 0 : i32
    %c0_i32_1 = arith.constant 0 : i32
    return %c0_i32, %c0_i32_0 : i32, i32
  }
  func.func @transform_4(%arg0: i32) -> (i32, i32) {
    %c0_i32 = arith.constant 0 : i32
    %c0_i32_0 = arith.constant 0 : i32
    %c0_i32_1 = arith.constant 0 : i32
    return %c0_i32, %c0_i32_0 : i32, i32
  }
  func.func @transform_5(%arg0: i32) -> (i32, i32, i32) {
    %c0_i32 = arith.constant 0 : i32
    %c0_i32_0 = arith.constant 0 : i32
    %c0_i32_1 = arith.constant 0 : i32
    %c0_i32_2 = arith.constant 0 : i32
    return %c0_i32, %c0_i32_0, %c0_i32_1 : i32, i32, i32
  }
  func.func @transform_6(%arg0: i32) -> (i32, i32) {
    %c0_i32 = arith.constant 0 : i32
    %c0_i32_0 = arith.constant 0 : i32
    %c0_i32_1 = arith.constant 0 : i32
    return %c0_i32, %c0_i32_0 : i32, i32
  }
  func.func @transform_7(%arg0: i32) -> (i32, i32, i32) {
    %c0_i32 = arith.constant 0 : i32
    %c0_i32_0 = arith.constant 0 : i32
    %c0_i32_1 = arith.constant 0 : i32
    return %arg0, %c0_i32, %c0_i32_0 : i32, i32, i32
  }
  func.func @transform_8(%arg0: i32) -> (i32, i32, i32) {
    %c0_i32 = arith.constant 0 : i32
    %c0_i32_0 = arith.constant 0 : i32
    %c0_i32_1 = arith.constant 0 : i32
    return %arg0, %c0_i32, %c0_i32_0 : i32, i32, i32
  }
  func.func @transform_9(%arg0: i32) -> (i32, i32, i32) {
    %c0_i32 = arith.constant 0 : i32
    %c0_i32_0 = arith.constant 0 : i32
    %c0_i32_1 = arith.constant 0 : i32
    return %arg0, %c0_i32, %c0_i32_0 : i32, i32, i32
  }
  func.func @transform_10(%arg0: i32) -> (i32, i32, i32) {
    %c0_i32 = arith.constant 0 : i32
    %c0_i32_0 = arith.constant 0 : i32
    %c0_i32_1 = arith.constant 0 : i32
    return %arg0, %c0_i32, %c0_i32_0 : i32, i32, i32
  }
  func.func @transform_11(%arg0: i32) -> (i32, i32) {
    %c0_i32 = arith.constant 0 : i32
    %c0_i32_0 = arith.constant 0 : i32
    %c0_i32_1 = arith.constant 0 : i32
    return %c0_i32, %c0_i32_0 : i32, i32
  }
}

</mosaic_0001>

<llo_original>
// kernel: tpu_custom_call.1
$region0: #{tpu_custom_call.1}
  #allocation0 [shape = 'u32[]', space=smem, size = 0x4, offset = 0x4, fixed_abs, tag = 'smem constant byte address 0x4 - core index']
  #allocation1 [shape = 'u32[72,128]{1,0:T(1,128)}', space=vmem, size = 0x9000, scoped, tag = 'internal scratch']
  #allocation2 [shape = 'f32[16,128]{1,0:T(8,128)}', space=vmem, size = 0x2000, scoped, tag = 'scratch operand']
  #allocation3 [shape = 'f32[56,128]{1,0:T(8,128)}', space=vmem, size = 0x7000, scoped, tag = 'scratch operand']
  #allocation4 [shape = 'f32[56,32]{1,0:T(8,128)}', space=vmem, size = 0x7000, scoped, tag = 'scratch operand']
  #allocation5 [shape = 'f32[16,56]{1,0:T(8,128)}', space=vmem, size = 0x2000, scoped, tag = 'scratch operand']
  %s0 = inlined_call_operand.vmem [shape: f32[16,128], index: 0, kind: input, shape index: {}]
  %s1 = inlined_call_operand.vmem [shape: f32[56,1], index: 1, kind: input, shape index: {}]
  %s2 = inlined_call_operand.vmem [shape: s32[56,1], index: 2, kind: input, shape index: {}]
  %s3 = inlined_call_operand.vmem [shape: s32[56,1], index: 3, kind: input, shape index: {}]
  %s4 = inlined_call_operand.vmem [shape: s32[2,128], index: 4, kind: input, shape index: {}]
  %s5 = inlined_call_operand.hbm [shape: f32[5,128,128], index: 5, kind: input, shape index: {}]
  %s6 = inlined_call_operand.vmem [shape: f32[9,128], index: 6, kind: input, shape index: {}]
  %s7 = inlined_call_operand.hbm [shape: f32[3,128,512], index: 7, kind: input, shape index: {}]
  %s8 = inlined_call_operand.hbm [shape: f32[3,128,256], index: 8, kind: input, shape index: {}]
  %s9 = inlined_call_operand.hbm [shape: f32[3,256,256], index: 9, kind: input, shape index: {}]
  %s10 = inlined_call_operand.vmem [shape: f32[3,3,256], index: 10, kind: input, shape index: {}]
  %s11 = inlined_call_operand.hbm [shape: f32[2,128], index: 11, kind: output, shape index: {}]
  %s12 = sld [smem:[#allocation0]]
  $region101: #{tpu_custom_call.1} parent=0
    _
  %s14 = ssub.s32 1, %s12
  %s15 = scalar_select 0, %s14, %s12
  $region1: #{tpu_custom_call.1} parent=0
    #allocation6 [shape = 'u8[327680]{0}', space=vmem, size = 0x50000, scoped, tag = 'input window, operand 5, single buffered']
    #allocation7 [shape = 's32[2]{0}', space=sflag, size = 0x8, scoped, tag = 'scoped memory for tpu_custom_call.1']
    #allocation8 [shape = 's32[2]{0}', space=sflag, size = 0x8, scoped, tag = 'scoped memory for tpu_custom_call.1']
    #allocation9 [shape = 'u8[524288]{0}', space=vmem, size = 0x80000, scoped, tag = 'input window, operand 7']
    #allocation10 [shape = 's32[2]{0}', space=sflag, size = 0x8, scoped, tag = 'scoped memory for tpu_custom_call.1']
    #allocation11 [shape = 'u8[262144]{0}', space=vmem, size = 0x40000, scoped, tag = 'input window, operand 8']
    #allocation12 [shape = 'u8[524288]{0}', space=vmem, size = 0x80000, scoped, tag = 'input window, operand 9']
    #allocation13 [shape = 's32[2]{0}', space=sflag, size = 0x8, scoped, tag = 'scoped memory for tpu_custom_call.1']
    #allocation14 [shape = 'u8[1024]{0}', space=vmem, size = 0x400, scoped, tag = 'output window, operand 0, single buffered']
    %16 = vsyncpa [#allocation7], 0
    %17 = vsyncpa [#allocation10], 0
    %s18 = scalar_lea.sflag [#allocation10], 1
    %19 = vsyncpa %s18, 0
    %20 = vsyncpa [#allocation13], 0
    %s21 = scalar_lea.sflag [#allocation13], 1
    %22 = vsyncpa %s21, 0
    %23 = vsyncpa [#allocation8], 0
    loop: start=0, step=1, limit=5
    $region2: #{tpu_custom_call.1} parent=1 // loop_pre_header
      _
    $region3: #{tpu_custom_call.1} parent=1 // loop_header
      %s25 = sphi 0, %s29
      %p26 = scmp.ge.s32.totalorder %s25, 5
      %s33 = sphi 0, %s33
      %s35 = sphi 0, %s33
      %s36 = sphi 0, %s35
      %s50 = sphi 0, %s36
      %s54 = sphi 0, %s54
      %s56 = sphi 0, %s54
      %s57 = sphi 0, %s56
      %s71 = sphi 0, %s57
      %s75 = sphi 0, %s75
      %s77 = sphi 0, %s75
      %s78 = sphi 0, %s77
      %s92 = sphi 0, %s78
      %s96 = sphi 0, %s96
      %s98 = sphi 0, %s96
      %s99 = sphi 0, %s98
      %s113 = sphi 0, %s99
      %s117 = sphi 0, %s117
      %s119 = sphi 0, %s117
      %s120 = sphi 0, %s119
      %s134 = sphi 0, %s120
      %s138 = sphi 0, %s138
      %s140 = sphi 0, %s138
      %s141 = sphi 0, %s140
      %s155 = sphi 0, %s141
      %s159 = sphi 0, %s159
      %s161 = sphi 0, %s159
      %s162 = sphi 0, %s161
      %s176 = sphi 0, %s162
      %s182 = sphi 0, %s184
      %s185 = sphi 0, %s182
      %s186 = sphi 0, %s185
      %s202 = sphi 0, %s186
      %s208 = sphi 0, %s210
      %s211 = sphi 0, %s208
      %s212 = sphi 0, %s211
      %s228 = sphi 0, %s212
      %s234 = sphi 0, %s236
      %s237 = sphi 0, %s234
      %s238 = sphi 0, %s237
      %s254 = sphi 0, %s238
      %s260 = sphi 0, %s262
      %s263 = sphi 0, %s260
      %s264 = sphi 0, %s263
      %s280 = sphi 0, %s264
      %s284 = sphi 0, %s284
      %s286 = sphi 0, %s284
      %s287 = sphi 0, %s286
      %s301 = sphi 0, %s287
    $region4: #{tpu_custom_call.1} parent=1 // loop_header_branch
      %28 = sbr.rel (%p26) target = $region8
    $region5: #{tpu_custom_call.1} parent=1 // loop_body
      %s30 = ssub.s32 %s25, 1
      %s31 = ssub.s32 %s25, 2
      %s32 = sadd.s32 %s25, 1
      %s34 = sadd.s32 %s33, 1
      %p37 = scmp.eq.s32.totalorder %s25, 2
      %p38 = scmp.ne.s32.totalorder %s33, %s35
      %p39 = scmp.eq.s32.totalorder %s25, 0
      %p40 = por %p38, %p39
      %p41 = scmp.ne.s32.totalorder %s33, %s35
      %p42 = scmp.eq.s32.totalorder %s30, 2
      %p43 = por %p41, %p42
      %p44 = scmp.ne.s32.totalorder %s35, %s36
      %p45 = scmp.eq.s32.totalorder %s30, 0
      %p46 = por %p44, %p45
      %p47 = scmp.ne.s32.totalorder %s35, %s36
      %p48 = scmp.eq.s32.totalorder %s31, 2
      %p49 = por %p47, %p48
      %p51 = scmp.ne.s32.totalorder %s36, %s50
      %p52 = scmp.eq.s32.totalorder %s31, 0
      %p53 = por %p51, %p52
      %s55 = sadd.s32 %s54, 1
      %p58 = scmp.eq.s32.totalorder %s25, 2
      %p59 = scmp.ne.s32.totalorder %s54, %s56
      %p60 = scmp.eq.s32.totalorder %s25, 0
      %p61 = por %p59, %p60
      %p62 = scmp.ne.s32.totalorder %s54, %s56
      %p63 = scmp.eq.s32.totalorder %s30, 2
      %p64 = por %p62, %p63
      %p65 = scmp.ne.s32.totalorder %s56, %s57
      %p66 = scmp.eq.s32.totalorder %s30, 0
      %p67 = por %p65, %p66
      %p68 = scmp.ne.s32.totalorder %s56, %s57
      %p69 = scmp.eq.s32.totalorder %s31, 2
      %p70 = por %p68, %p69
      %p72 = scmp.ne.s32.totalorder %s57, %s71
      %p73 = scmp.eq.s32.totalorder %s31, 0
      %p74 = por %p72, %p73
      %s76 = sadd.s32 %s75, 1
      %p79 = scmp.eq.s32.totalorder %s25, 2
      %p80 = scmp.ne.s32.totalorder %s75, %s77
      %p81 = scmp.eq.s32.totalorder %s25, 0
      %p82 = por %p80, %p81
      %p83 = scmp.ne.s32.totalorder %s75, %s77
      %p84 = scmp.eq.s32.totalorder %s30, 2
      %p85 = por %p83, %p84
      %p86 = scmp.ne.s32.totalorder %s77, %s78
      %p87 = scmp.eq.s32.totalorder %s30, 0
      %p88 = por %p86, %p87
      %p89 = scmp.ne.s32.totalorder %s77, %s78
      %p90 = scmp.eq.s32.totalorder %s31, 2
      %p91 = por %p89, %p90
      %p93 = scmp.ne.s32.totalorder %s78, %s92
      %p94 = scmp.eq.s32.totalorder %s31, 0
      %p95 = por %p93, %p94
      %s97 = sadd.s32 %s96, 1
      %p100 = scmp.eq.s32.totalorder %s25, 2
      %p101 = scmp.ne.s32.totalorder %s96, %s98
      %p102 = scmp.eq.s32.totalorder %s25, 0
      %p103 = por %p101, %p102
      %p104 = scmp.ne.s32.totalorder %s96, %s98
      %p105 = scmp.eq.s32.totalorder %s30, 2
      %p106 = por %p104, %p105
      %p107 = scmp.ne.s32.totalorder %s98, %s99
      %p108 = scmp.eq.s32.totalorder %s30, 0
      %p109 = por %p107, %p108
      %p110 = scmp.ne.s32.totalorder %s98, %s99
      %p111 = scmp.eq.s32.totalorder %s31, 2
      %p112 = por %p110, %p111
      %p114 = scmp.ne.s32.totalorder %s99, %s113
      %p115 = scmp.eq.s32.totalorder %s31, 0
      %p116 = por %p114, %p115
      %s118 = sadd.s32 %s117, 1
      %p121 = scmp.eq.s32.totalorder %s25, 2
      %p122 = scmp.ne.s32.totalorder %s117, %s119
      %p123 = scmp.eq.s32.totalorder %s25, 0
      %p124 = por %p122, %p123
      %p125 = scmp.ne.s32.totalorder %s117, %s119
      %p126 = scmp.eq.s32.totalorder %s30, 2
      %p127 = por %p125, %p126
      %p128 = scmp.ne.s32.totalorder %s119, %s120
      %p129 = scmp.eq.s32.totalorder %s30, 0
      %p130 = por %p128, %p129
      %p131 = scmp.ne.s32.totalorder %s119, %s120
      %p132 = scmp.eq.s32.totalorder %s31, 2
      %p133 = por %p131, %p132
      %p135 = scmp.ne.s32.totalorder %s120, %s134
      %p136 = scmp.eq.s32.totalorder %s31, 0
      %p137 = por %p135, %p136
      %s139 = sadd.s32 %s138, 1
      %p142 = scmp.eq.s32.totalorder %s25, 2
      %p143 = scmp.ne.s32.totalorder %s138, %s140
      %p144 = scmp.eq.s32.totalorder %s25, 0
      %p145 = por %p143, %p144
      %p146 = scmp.ne.s32.totalorder %s138, %s140
      %p147 = scmp.eq.s32.totalorder %s30, 2
      %p148 = por %p146, %p147
      %p149 = scmp.ne.s32.totalorder %s140, %s141
      %p150 = scmp.eq.s32.totalorder %s30, 0
      %p151 = por %p149, %p150
      %p152 = scmp.ne.s32.totalorder %s140, %s141
      %p153 = scmp.eq.s32.totalorder %s31, 2
      %p154 = por %p152, %p153
      %p156 = scmp.ne.s32.totalorder %s141, %s155
      %p157 = scmp.eq.s32.totalorder %s31, 0
      %p158 = por %p156, %p157
      %s160 = sadd.s32 %s159, 1
      %p163 = scmp.eq.s32.totalorder %s25, 2
      %p164 = scmp.ne.s32.totalorder %s159, %s161
      %p165 = scmp.eq.s32.totalorder %s25, 0
      %p166 = por %p164, %p165
      %p167 = scmp.ne.s32.totalorder %s159, %s161
      %p168 = scmp.eq.s32.totalorder %s30, 2
      %p169 = por %p167, %p168
      %p170 = scmp.ne.s32.totalorder %s161, %s162
      %p171 = scmp.eq.s32.totalorder %s30, 0
      %p172 = por %p170, %p171
      %p173 = scmp.ne.s32.totalorder %s161, %s162
      %p174 = scmp.eq.s32.totalorder %s31, 2
      %p175 = por %p173, %p174
      %p177 = scmp.ne.s32.totalorder %s162, %s176
      %p178 = scmp.eq.s32.totalorder %s31, 0
      %p179 = por %p177, %p178
      %s180 = ssub.s32 %s25, %s32
      %p181 = scmp.eq.s32.totalorder %s180, 0
      %s183 = sadd.s32 %s182, 1
      %s184 = scalar_select %p181, %s182, %s183
      %p187 = pneg %p181
      %p188 = scmp.eq.s32.totalorder %s25, 2
      %p189 = por %p187, %p188
      %p190 = scmp.ne.s32.totalorder %s182, %s185
      %p191 = scmp.eq.s32.totalorder %s25, 0
      %p192 = por %p190, %p191
      %p193 = scmp.ne.s32.totalorder %s182, %s185
      %p194 = scmp.eq.s32.totalorder %s30, 2
      %p195 = por %p193, %p194
      %p196 = scmp.ne.s32.totalorder %s185, %s186
      %p197 = scmp.eq.s32.totalorder %s30, 0
      %p198 = por %p196, %p197
      %p199 = scmp.ne.s32.totalorder %s185, %s186
      %p200 = scmp.eq.s32.totalorder %s31, 2
      %p201 = por %p199, %p200
      %p203 = scmp.ne.s32.totalorder %s186, %s202
      %p204 = scmp.eq.s32.totalorder %s31, 0
      %p205 = por %p203, %p204
      %s206 = ssub.s32 %s25, %s32
      %p207 = scmp.eq.s32.totalorder %s206, 0
      %s209 = sadd.s32 %s208, 1
      %s210 = scalar_select %p207, %s208, %s209
      %p213 = pneg %p207
      %p214 = scmp.eq.s32.totalorder %s25, 2
      %p215 = por %p213, %p214
      %p216 = scmp.ne.s32.totalorder %s208, %s211
      %p217 = scmp.eq.s32.totalorder %s25, 0
      %p218 = por %p216, %p217
      %p219 = scmp.ne.s32.totalorder %s208, %s211
      %p220 = scmp.eq.s32.totalorder %s30, 2
      %p221 = por %p219, %p220
      %p222 = scmp.ne.s32.totalorder %s211, %s212
      %p223 = scmp.eq.s32.totalorder %s30, 0
      %p224 = por %p222, %p223
      %p225 = scmp.ne.s32.totalorder %s211, %s212
      %p226 = scmp.eq.s32.totalorder %s31, 2
      %p227 = por %p225, %p226
      %p229 = scmp.ne.s32.totalorder %s212, %s228
      %p230 = scmp.eq.s32.totalorder %s31, 0
      %p231 = por %p229, %p230
      %s232 = ssub.s32 %s25, %s32
      %p233 = scmp.eq.s32.totalorder %s232, 0
      %s235 = sadd.s32 %s234, 1
      %s236 = scalar_select %p233, %s234, %s235
      %p239 = pneg %p233
      %p240 = scmp.eq.s32.totalorder %s25, 2
      %p241 = por %p239, %p240
      %p242 = scmp.ne.s32.totalorder %s234, %s237
      %p243 = scmp.eq.s32.totalorder %s25, 0
      %p244 = por %p242, %p243
      %p245 = scmp.ne.s32.totalorder %s234, %s237
      %p246 = scmp.eq.s32.totalorder %s30, 2
      %p247 = por %p245, %p246
      %p248 = scmp.ne.s32.totalorder %s237, %s238
      %p249 = scmp.eq.s32.totalorder %s30, 0
      %p250 = por %p248, %p249
      %p251 = scmp.ne.s32.totalorder %s237, %s238
      %p252 = scmp.eq.s32.totalorder %s31, 2
      %p253 = por %p251, %p252
      %p255 = scmp.ne.s32.totalorder %s238, %s254
      %p256 = scmp.eq.s32.totalorder %s31, 0
      %p257 = por %p255, %p256
      %s258 = ssub.s32 %s25, %s32
      %p259 = scmp.eq.s32.totalorder %s258, 0
      %s261 = sadd.s32 %s260, 1
      %s262 = scalar_select %p259, %s260, %s261
      %p265 = pneg %p259
      %p266 = scmp.eq.s32.totalorder %s25, 2
      %p267 = por %p265, %p266
      %p268 = scmp.ne.s32.totalorder %s260, %s263
      %p269 = scmp.eq.s32.totalorder %s25, 0
      %p270 = por %p268, %p269
      %p271 = scmp.ne.s32.totalorder %s260, %s263
      %p272 = scmp.eq.s32.totalorder %s30, 2
      %p273 = por %p271, %p272
      %p274 = scmp.ne.s32.totalorder %s263, %s264
      %p275 = scmp.eq.s32.totalorder %s30, 0
      %p276 = por %p274, %p275
      %p277 = scmp.ne.s32.totalorder %s263, %s264
      %p278 = scmp.eq.s32.totalorder %s31, 2
      %p279 = por %p277, %p278
      %p281 = scmp.ne.s32.totalorder %s264, %s280
      %p282 = scmp.eq.s32.totalorder %s31, 0
      %p283 = por %p281, %p282
      %s285 = sadd.s32 %s284, 1
      %p288 = scmp.eq.s32.totalorder %s25, 2
      %p289 = scmp.ne.s32.totalorder %s284, %s286
      %p290 = scmp.eq.s32.totalorder %s25, 0
      %p291 = por %p289, %p290
      %p292 = scmp.ne.s32.totalorder %s284, %s286
      %p293 = scmp.eq.s32.totalorder %s30, 2
      %p294 = por %p292, %p293
      %p295 = scmp.ne.s32.totalorder %s286, %s287
      %p296 = scmp.eq.s32.totalorder %s30, 0
      %p297 = por %p295, %p296
      %p298 = scmp.ne.s32.totalorder %s286, %s287
      %p299 = scmp.eq.s32.totalorder %s31, 2
      %p300 = por %p298, %p299
      %p302 = scmp.ne.s32.totalorder %s287, %s301
      %p303 = scmp.eq.s32.totalorder %s31, 0
      %p304 = por %p302, %p303
      %p305 = scmp.le.s32.totalorder 1, %s25
      %p306 = scmp.lt.s32.totalorder %s25, 4
      %p307 = pnand %p305, %p306
      %p308 = pneg %p307
      // Predicated region
      $region9: #{tpu_custom_call.1} parent=5 // pred_check
        _
      $region10: #{tpu_custom_call.1} parent=5 // pred_check_branch
        %310 = sbr.rel (%p307) target = $region12
      $region11: #{tpu_custom_call.1} parent=5 // pred_region
        %s311 = ssub.s32 %s25, 1
        // Predicated region
        $region13: #{tpu_custom_call.1} parent=11 // pred_check
          %p312 = pneg %p46
        $region14: #{tpu_custom_call.1} parent=11 // pred_check_branch
          %314 = sbr.rel (%p312) target = $region16
        $region15: #{tpu_custom_call.1} parent=11 // pred_region
          _
        $region16: #{tpu_custom_call.1} parent=11 // pred_fallthru
          _
        // Predicated region
        $region17: #{tpu_custom_call.1} parent=11 // pred_check
          %p315 = pneg %p67
        $region18: #{tpu_custom_call.1} parent=11 // pred_check_branch
          %317 = sbr.rel (%p315) target = $region20
        $region19: #{tpu_custom_call.1} parent=11 // pred_region
          _
        $region20: #{tpu_custom_call.1} parent=11 // pred_fallthru
          _
        // Predicated region
        $region21: #{tpu_custom_call.1} parent=11 // pred_check
          %p318 = pneg %p88
        $region22: #{tpu_custom_call.1} parent=11 // pred_check_branch
          %320 = sbr.rel (%p318) target = $region24
        $region23: #{tpu_custom_call.1} parent=11 // pred_region
          _
        $region24: #{tpu_custom_call.1} parent=11 // pred_fallthru
          _
        // Predicated region
        $region25: #{tpu_custom_call.1} parent=11 // pred_check
          %p321 = pneg %p109
        $region26: #{tpu_custom_call.1} parent=11 // pred_check_branch
          %323 = sbr.rel (%p321) target = $region28
        $region27: #{tpu_custom_call.1} parent=11 // pred_region
          _
        $region28: #{tpu_custom_call.1} parent=11 // pred_fallthru
          _
        // Predicated region
        $region29: #{tpu_custom_call.1} parent=11 // pred_check
          %p324 = pneg %p130
        $region30: #{tpu_custom_call.1} parent=11 // pred_check_branch
          %326 = sbr.rel (%p324) target = $region32
        $region31: #{tpu_custom_call.1} parent=11 // pred_region
          _
        $region32: #{tpu_custom_call.1} parent=11 // pred_fallthru
          _
        // Predicated region
        $region33: #{tpu_custom_call.1} parent=11 // pred_check
          %p327 = pneg %p151
        $region34: #{tpu_custom_call.1} parent=11 // pred_check_branch
          %329 = sbr.rel (%p327) target = $region36
        $region35: #{tpu_custom_call.1} parent=11 // pred_region
          %331 = vsyncadd [#allocation7], 0
          %s332 = sshll.u32 %s5, 4
          %s333 = int_to_ptr.hbm [resolvable:$true] %s332
          %s334 = sshll.u32 [#allocation6], 4
          %s335 = int_to_ptr.vmem [resolvable:$true] %s334
          %340 = dma.hbm_to_vmem [thread:$0]  %s333, 10240, %s335, [#allocation7], 128, 128, 8
        $region36: #{tpu_custom_call.1} parent=11 // pred_fallthru
          _
        // Predicated region
        $region37: #{tpu_custom_call.1} parent=11 // pred_check
          %p341 = pneg %p172
        $region38: #{tpu_custom_call.1} parent=11 // pred_check_branch
          %343 = sbr.rel (%p341) target = $region40
        $region39: #{tpu_custom_call.1} parent=11 // pred_region
          _
        $region40: #{tpu_custom_call.1} parent=11 // pred_fallthru
          _
      $region12: #{tpu_custom_call.1} parent=5 // pred_fallthru
        _
      %p344 = scmp.lt.s32.totalorder %s25, 3
      // Predicated region
      $region41: #{tpu_custom_call.1} parent=5 // pred_check
        %p345 = pneg %p344
      $region42: #{tpu_custom_call.1} parent=5 // pred_check_branch
        %347 = sbr.rel (%p345) target = $region44
      $region43: #{tpu_custom_call.1} parent=5 // pred_region
        // Predicated region
        $region45: #{tpu_custom_call.1} parent=43 // pred_check
          %p348 = pneg %p192
        $region46: #{tpu_custom_call.1} parent=43 // pred_check_branch
          %350 = sbr.rel (%p348) target = $region48
        $region47: #{tpu_custom_call.1} parent=43 // pred_region
          %s351 = sand.u32 %s25, 1
          %s352 = scalar_lea.sflag [#allocation10], %s351
          %s353 = sand.u32 %s182, 1
          %s354 = smul.addr %s353, 512
          %s355 = scalar_lea.vmem [#allocation9], %s354
          %357 = vsyncadd %s352, 0
          %s358 = smul.addr %s25, 64
          %s359 = smul.addr %s358, 8
          %s360 = scalar_lea.hbm %s7, %s359
          %s361 = sshll.u32 %s360, 4
          %s362 = int_to_ptr.hbm [resolvable:$true] %s361
          %s363 = sshll.u32 %s355, 4
          %s364 = int_to_ptr.vmem [resolvable:$true] %s363
          %369 = dma.hbm_to_vmem [thread:$0]  %s362, 8192, %s364, %s352, 512, 512, 32
        $region48: #{tpu_custom_call.1} parent=43 // pred_fallthru
          _
        // Predicated region
        $region49: #{tpu_custom_call.1} parent=43 // pred_check
          %p370 = pneg %p218
        $region50: #{tpu_custom_call.1} parent=43 // pred_check_branch
          %372 = sbr.rel (%p370) target = $region52
        $region51: #{tpu_custom_call.1} parent=43 // pred_region
          %s373 = sand.u32 %s25, 1
          %s374 = scalar_lea.sflag [#allocation10], %s373
          %s375 = sand.u32 %s208, 1
          %s376 = smul.addr %s375, 256
          %s377 = scalar_lea.vmem [#allocation11], %s376
          %379 = vsyncadd %s374, 0
          %s380 = smul.addr %s25, 32
          %s381 = smul.addr %s380, 8
          %s382 = scalar_lea.hbm %s8, %s381
          %s383 = sshll.u32 %s382, 4
          %s384 = int_to_ptr.hbm [resolvable:$true] %s383
          %s385 = sshll.u32 %s377, 4
          %s386 = int_to_ptr.vmem [resolvable:$true] %s385
          %391 = dma.hbm_to_vmem [thread:$0]  %s384, 4096, %s386, %s374, 256, 256, 16
        $region52: #{tpu_custom_call.1} parent=43 // pred_fallthru
          _
        // Predicated region
        $region53: #{tpu_custom_call.1} parent=43 // pred_check
          %p392 = pneg %p244
        $region54: #{tpu_custom_call.1} parent=43 // pred_check_branch
          %394 = sbr.rel (%p392) target = $region56
        $region55: #{tpu_custom_call.1} parent=43 // pred_region
          %s395 = sand.u32 %s234, 1
          %s396 = scalar_lea.sflag [#allocation13], %s395
          %s397 = sand.u32 %s234, 1
          %s398 = smul.addr %s397, 512
          %s399 = scalar_lea.vmem [#allocation12], %s398
          %401 = vsyncadd %s396, 0
          %s402 = smul.addr %s25, 64
          %s403 = smul.addr %s402, 8
          %s404 = scalar_lea.hbm %s9, %s403
          %s405 = sshll.u32 %s404, 4
          %s406 = int_to_ptr.hbm [resolvable:$true] %s405
          %s407 = sshll.u32 %s399, 4
          %s408 = int_to_ptr.vmem [resolvable:$true] %s407
          %413 = dma.hbm_to_vmem [thread:$0]  %s406, 8192, %s408, %s396, 256, 256, 16
        $region56: #{tpu_custom_call.1} parent=43 // pred_fallthru
          _
        // Predicated region
        $region57: #{tpu_custom_call.1} parent=43 // pred_check
          %p414 = pneg %p270
        $region58: #{tpu_custom_call.1} parent=43 // pred_check_branch
          %416 = sbr.rel (%p414) target = $region60
        $region59: #{tpu_custom_call.1} parent=43 // pred_region
          %p417 = scmp.lt.s32.totalorder %s25, 2
          %s418 = scalar_select %p417, %s25, 2
          %s419 = smul.addr %s418, 2
          %s420 = smul.addr %s419, 4
          %s421 = scalar_lea.vmem %s10, %s420
        $region60: #{tpu_custom_call.1} parent=43 // pred_fallthru
          _
      $region44: #{tpu_custom_call.1} parent=5 // pred_fallthru
        _
      %p422 = scmp.le.s32.totalorder 1, %s25
      %p423 = scmp.lt.s32.totalorder %s25, 4
      %p424 = pnand %p422, %p423
      %p425 = pneg %p424
      // Predicated region
      $region61: #{tpu_custom_call.1} parent=5 // pred_check
        _
      $region62: #{tpu_custom_call.1} parent=5 // pred_check_branch
        %427 = sbr.rel (%p424) target = $region64
      $region63: #{tpu_custom_call.1} parent=5 // pred_region
        %s428 = ssub.s32 %s25, 1
        // Predicated region
        $region65: #{tpu_custom_call.1} parent=63 // pred_check
          %p429 = pneg %p151
        $region66: #{tpu_custom_call.1} parent=63 // pred_check_branch
          %431 = sbr.rel (%p429) target = $region68
        $region67: #{tpu_custom_call.1} parent=63 // pred_region
          %433 = dma.done [#allocation7], 10240
        $region68: #{tpu_custom_call.1} parent=63 // pred_fallthru
          _
        %s434 = sand.u32 %s30, 1
        %s435 = scalar_lea.sflag [#allocation10], %s434
        %s436 = sand.u32 %s185, 1
        %s437 = smul.addr %s436, 512
        %s438 = scalar_lea.vmem [#allocation9], %s437
        // Predicated region
        $region69: #{tpu_custom_call.1} parent=63 // pred_check
          %p439 = pneg %p198
        $region70: #{tpu_custom_call.1} parent=63 // pred_check_branch
          %441 = sbr.rel (%p439) target = $region72
        $region71: #{tpu_custom_call.1} parent=63 // pred_region
          %443 = dma.done %s435, 8192
        $region72: #{tpu_custom_call.1} parent=63 // pred_fallthru
          _
        %s444 = sand.u32 %s30, 1
        %s445 = scalar_lea.sflag [#allocation10], %s444
        %s446 = sand.u32 %s211, 1
        %s447 = smul.addr %s446, 256
        %s448 = scalar_lea.vmem [#allocation11], %s447
        // Predicated region
        $region73: #{tpu_custom_call.1} parent=63 // pred_check
          %p449 = pneg %p224
        $region74: #{tpu_custom_call.1} parent=63 // pred_check_branch
          %451 = sbr.rel (%p449) target = $region76
        $region75: #{tpu_custom_call.1} parent=63 // pred_region
          %453 = dma.done %s445, 4096
        $region76: #{tpu_custom_call.1} parent=63 // pred_fallthru
          _
        %s454 = sand.u32 %s237, 1
        %s455 = scalar_lea.sflag [#allocation13], %s454
        %s456 = sand.u32 %s237, 1
        %s457 = smul.addr %s456, 512
        %s458 = scalar_lea.vmem [#allocation12], %s457
        // Predicated region
        $region77: #{tpu_custom_call.1} parent=63 // pred_check
          %p459 = pneg %p250
        $region78: #{tpu_custom_call.1} parent=63 // pred_check_branch
          %461 = sbr.rel (%p459) target = $region80
        $region79: #{tpu_custom_call.1} parent=63 // pred_region
          %463 = dma.done %s455, 8192
        $region80: #{tpu_custom_call.1} parent=63 // pred_fallthru
          _
        %p464 = pneg %p46
        %p465 = pneg %p43
        %p466 = pneg %p67
        %p467 = pneg %p64
        %p468 = pneg %p88
        %p469 = pneg %p85
        %p470 = pneg %p109
        %p471 = pneg %p106
        %p472 = pneg %p130
        %p473 = pneg %p127
        %p474 = pneg %p151
        %p475 = pneg %p148
        %p476 = pneg %p172
        %p477 = pneg %p169
        %s478 = sand.u32 %s30, 1
        %s479 = scalar_lea.sflag [#allocation10], %s478
        %s480 = sand.u32 %s185, 1
        %s481 = smul.addr %s480, 512
        %s482 = scalar_lea.vmem [#allocation9], %s481
        %p483 = pneg %p198
        %p484 = pneg %p195
        %s485 = sand.u32 %s30, 1
        %s486 = scalar_lea.sflag [#allocation10], %s485
        %s487 = sand.u32 %s211, 1
        %s488 = smul.addr %s487, 256
        %s489 = scalar_lea.vmem [#allocation11], %s488
        %p490 = pneg %p224
        %p491 = pneg %p221
        %s492 = sand.u32 %s237, 1
        %s493 = scalar_lea.sflag [#allocation13], %s492
        %s494 = sand.u32 %s237, 1
        %s495 = smul.addr %s494, 512
        %s496 = scalar_lea.vmem [#allocation12], %s495
        %p497 = pneg %p250
        %p498 = pneg %p247
        %p499 = scmp.lt.s32.totalorder %s30, 2
        %s500 = scalar_select %p499, %s30, 2
        %s501 = smul.addr %s500, 2
        %s502 = smul.addr %s501, 4
        %s503 = scalar_lea.vmem %s10, %s502
        %p504 = pneg %p276
        %p505 = pneg %p273
        %p506 = pneg %p297
        %p507 = pneg %p294
        %p508 = scmp.lt.s32.totalorder %s30, 2
        %s509 = scalar_select %p508, %s30, 2
        %s510 = smul.addr %s509, 2
        %s511 = smul.addr %s510, 4
        %s512 = scalar_lea.vmem %s10, %s511
        %p513 = scmp.eq.s32.totalorder %s30, 0
        // Predicated region
        $region81: #{tpu_custom_call.1} parent=63 // pred_check
          %p514 = pneg %p513
        $region82: #{tpu_custom_call.1} parent=63 // pred_check_branch
          %516 = sbr.rel (%p514) target = $region84
        $region83: #{tpu_custom_call.1} parent=63 // pred_region
          %v517 = vld [vmem:[%s6] sm:$0x1]
          %v518 = vld [vmem:[%s6 + $0x1] sm:$0x1]
          %v519 = vld [vmem:[%s6 + $0x2] sm:$0x1]
          %v520 = vld [vmem:[%s6 + $0x3] sm:$0x1]
          %v521 = vld [vmem:[%s6 + $0x4] sm:$0x1]
          %v522 = vld [vmem:[%s6 + $0x5] sm:$0x1]
          %v523 = vld [vmem:[%s6 + $0x6] sm:$0x1]
          %v524 = vld [vmem:[%s0] sm:$0xff]
          %v525 = vld [vmem:[%s0 + $0x8] sm:$0xff]
          %v526 = vld [vmem:[#allocation6] sm:$0xff]
          %v527 = vld [vmem:[#allocation6 + $0x8] sm:$0xff]
          %v528 = vld [vmem:[#allocation6 + $0x10] sm:$0xff]
          %v529 = vld [vmem:[#allocation6 + $0x18] sm:$0xff]
          %v530 = vld [vmem:[#allocation6 + $0x20] sm:$0xff]
          %v531 = vld [vmem:[#allocation6 + $0x28] sm:$0xff]
          %v532 = vld [vmem:[#allocation6 + $0x30] sm:$0xff]
          %v533 = vld [vmem:[#allocation6 + $0x38] sm:$0xff]
          %v534 = vld [vmem:[#allocation6 + $0x40] sm:$0xff]
          %v535 = vld [vmem:[#allocation6 + $0x48] sm:$0xff]
          %v536 = vld [vmem:[#allocation6 + $0x50] sm:$0xff]
          %v537 = vld [vmem:[#allocation6 + $0x58] sm:$0xff]
          %v538 = vld [vmem:[#allocation6 + $0x60] sm:$0xff]
          %v539 = vld [vmem:[#allocation6 + $0x68] sm:$0xff]
          %v540 = vld [vmem:[#allocation6 + $0x70] sm:$0xff]
          %v541 = vld [vmem:[#allocation6 + $0x78] sm:$0xff]
          %v542 = vperm.slane %v519, 0
          %543 = vmatpush.msra.mxu0 %v541
          %544 = vmatpush.msra.mxu0 %v540
          %545 = vmatpush.msra.mxu0 %v539
          %546 = vmatpush.msra.mxu0 %v538
          %547 = vmatpush.msra.mxu0 %v537
          %548 = vmatpush.msra.mxu0 %v536
          %549 = vmatpush.msra.mxu0 %v535
          %550 = vmatpush.msra.mxu0 %v534
          %551 = vmatpush.msra.mxu0 %v533
          %552 = vmatpush.msra.mxu0 %v532
          %553 = vmatpush.msra.mxu0 %v531
          %554 = vmatpush.msra.mxu0 %v530
          %555 = vmatpush.msra.mxu0 %v529
          %556 = vmatpush.msra.mxu0 %v528
          %557 = vmatpush.msra.mxu0 %v527
          %558 = vmatpush.msra.mxu0 %v526
          %559 = vmatmul.f32.gmra.mxu0 %v524
          %v560 = vpop.f32.mrf.mxu0
          %v561 = vadd.f32 %v542, %v560
          %562 = vmatmul.f32.gmra.mxu0 %v525
          %v563 = vpop.f32.mrf.mxu0
          %v564 = vadd.f32 %v542, %v563
          %565 = vdwg.mxu0
          %566 = vst [vmem:[#allocation2] sm:$0xff] %v561
          %567 = vst [vmem:[#allocation2 + $0x8] sm:$0xff] %v564
          %v568 = vld [vmem:[%s1] sm:$0xff]
          %v569 = vld [vmem:[%s1 + $0x8] sm:$0xff]
          %v570 = vld [vmem:[%s1 + $0x10] sm:$0xff]
          %v571 = vld [vmem:[%s1 + $0x18] sm:$0xff]
          %573 = vset.pattern.permute.xlu0 0
          %574 = vperm.xlu0 %573, %v568
          %v575 = vpop.permute.xlu0 %574
          %578 = vset.pattern.permute.xlu0 0
          %579 = vperm.xlu0 %578, %v569
          %v580 = vpop.permute.xlu0 %579
          %583 = vset.pattern.permute.xlu0 0
          %584 = vperm.xlu0 %583, %v570
          %v585 = vpop.permute.xlu0 %584
          %588 = vset.pattern.permute.xlu0 0
          %589 = vperm.xlu0 %588, %v571
          %v590 = vpop.permute.xlu0 %589
          %v592 = vperm.slane %v517, 0
          %v593 = vsub.f32 %v575, %v592
          %v594 = vsub.f32 %v580, %v592
          %v595 = vsub.f32 %v585, %v592
          %v596 = vsub.f32 %v590, %v592
          %v597 = vmul.f32 %v593, 15.875
          %v598 = vmul.f32 %v594, 15.875
          %v599 = vmul.f32 %v595, 15.875
          %v600 = vmul.f32 %v596, 15.875
          %v601 = vmul.f32 %v597, %v597
          %v602 = vmul.f32 %v598, %v598
          %v603 = vmul.f32 %v599, %v599
          %v604 = vmul.f32 %v600, %v600
          %v605 = vsub.f32 0.0, %v601
          %v606 = vsub.f32 0.0, %v602
          %v607 = vsub.f32 0.0, %v603
          %v608 = vsub.f32 0.0, %v604
          %v609 = vmul.f32 %v605, 1.442695
          %v610 = vpow.pop %v609
          %v611 = vmul.f32 %v606, 1.442695
          %v612 = vpow.pop %v611
          %v613 = vmul.f32 %v607, 1.442695
          %v614 = vpow.pop %v613
          %v615 = vmul.f32 %v608, 1.442695
          %v616 = vpow.pop %v615
          %s617 = scalar_lea.vmem [#allocation6], 128
          %v618 = vld [vmem:[%s617] sm:$0xff]
          %v619 = vld [vmem:[%s617 + $0x8] sm:$0xff]
          %v620 = vld [vmem:[%s617 + $0x10] sm:$0xff]
          %v621 = vld [vmem:[%s617 + $0x18] sm:$0xff]
          %v622 = vld [vmem:[%s617 + $0x20] sm:$0xff]
          %v623 = vld [vmem:[%s617 + $0x28] sm:$0xff]
          %v624 = vld [vmem:[%s617 + $0x30] sm:$0xff]
          %v625 = vld [vmem:[%s617 + $0x38] sm:$0xff]
          %v626 = vld [vmem:[%s617 + $0x40] sm:$0xff]
          %v627 = vld [vmem:[%s617 + $0x48] sm:$0xff]
          %v628 = vld [vmem:[%s617 + $0x50] sm:$0xff]
          %v629 = vld [vmem:[%s617 + $0x58] sm:$0xff]
          %v630 = vld [vmem:[%s617 + $0x60] sm:$0xff]
          %v631 = vld [vmem:[%s617 + $0x68] sm:$0xff]
          %v632 = vld [vmem:[%s617 + $0x70] sm:$0xff]
          %v633 = vld [vmem:[%s617 + $0x78] sm:$0xff]
          %v634 = vperm.slane %v520, 0
          %635 = vmatpush.msra.mxu0 %v633
          %636 = vmatpush.msra.mxu0 %v632
          %637 = vmatpush.msra.mxu0 %v631
          %638 = vmatpush.msra.mxu0 %v630
          %639 = vmatpush.msra.mxu0 %v629
          %640 = vmatpush.msra.mxu0 %v628
          %641 = vmatpush.msra.mxu0 %v627
          %642 = vmatpush.msra.mxu0 %v626
          %643 = vmatpush.msra.mxu0 %v625
          %644 = vmatpush.msra.mxu0 %v624
          %645 = vmatpush.msra.mxu0 %v623
          %646 = vmatpush.msra.mxu0 %v622
          %647 = vmatpush.msra.mxu0 %v621
          %648 = vmatpush.msra.mxu0 %v620
          %649 = vmatpush.msra.mxu0 %v619
          %650 = vmatpush.msra.mxu0 %v618
          %651 = vmatmul.f32.gmra.mxu0 %v610
          %v652 = vpop.f32.mrf.mxu0
          %v653 = vadd.f32 %v634, %v652
          %654 = vmatmul.f32.gmra.mxu0 %v612
          %v655 = vpop.f32.mrf.mxu0
          %v656 = vadd.f32 %v634, %v655
          %657 = vmatmul.f32.gmra.mxu0 %v614
          %v658 = vpop.f32.mrf.mxu0
          %v659 = vadd.f32 %v634, %v658
          %660 = vmatmul.f32.gmra.mxu0 %v616
          %v661 = vpop.f32.mrf.mxu0
          %v662 = vadd.f32 %v634, %v661
          %663 = vdwg.mxu0
          %v664 = vxor.u32 %v653, 2147483648
          %v665 = vxor.u32 %v656, 2147483648
          %v666 = vxor.u32 %v659, 2147483648
          %v667 = vxor.u32 %v662, 2147483648
          %v668 = vmul.f32 %v664, 1.442695
          %v669 = vpow.pop %v668
          %v670 = vmul.f32 %v665, 1.442695
          %v671 = vpow.pop %v670
          %v672 = vmul.f32 %v666, 1.442695
          %v673 = vpow.pop %v672
          %v674 = vmul.f32 %v667, 1.442695
          %v675 = vpow.pop %v674
          %v676 = vadd.f32 %v669, 1.0
          %v677 = vadd.f32 %v671, 1.0
          %v678 = vadd.f32 %v673, 1.0
          %v679 = vadd.f32 %v675, 1.0
          %v680 = vrcp.pop %v676
          %v681 = vmul.f32 %v676, %v680
          %v682 = vsub.f32 1.0, %v681
          %v683 = vmul.f32 %v680, %v682
          %v684 = vadd.f32 %v680, %v683
          %vm685 = vweird.f32 %v676
          %vm686 = vweird.f32 %v680
          %vm687 = vmor %vm685, %vm686
          %v688 = vsel %vm687, %v680, %v684
          %v689 = vand.u32 2147483647, %v676
          %vm690 = vcmp.eq.f32.partialorder %v689, 8.507059e+37
          %v691 = vand.u32 %v676, 2147483648
          %v692 = vor.u32 1.1754944e-38, %v691
          %v693 = vsel %vm690, %v692, %v688
          %v694 = vmul.f32 1.0, %v693
          %v695 = vrcp.pop %v677
          %v696 = vmul.f32 %v677, %v695
          %v697 = vsub.f32 1.0, %v696
          %v698 = vmul.f32 %v695, %v697
          %v699 = vadd.f32 %v695, %v698
          %vm700 = vweird.f32 %v677
          %vm701 = vweird.f32 %v695
          %vm702 = vmor %vm700, %vm701
          %v703 = vsel %vm702, %v695, %v699
          %v704 = vand.u32 2147483647, %v677
          %vm705 = vcmp.eq.f32.partialorder %v704, 8.507059e+37
          %v706 = vand.u32 %v677, 2147483648
          %v707 = vor.u32 1.1754944e-38, %v706
          %v708 = vsel %vm705, %v707, %v703
          %v709 = vmul.f32 1.0, %v708
          %v710 = vrcp.pop %v678
          %v711 = vmul.f32 %v678, %v710
          %v712 = vsub.f32 1.0, %v711
          %v713 = vmul.f32 %v710, %v712
          %v714 = vadd.f32 %v710, %v713
          %vm715 = vweird.f32 %v678
          %vm716 = vweird.f32 %v710
          %vm717 = vmor %vm715, %vm716
          %v718 = vsel %vm717, %v710, %v714
          %v719 = vand.u32 2147483647, %v678
          %vm720 = vcmp.eq.f32.partialorder %v719, 8.507059e+37
          %v721 = vand.u32 %v678, 2147483648
          %v722 = vor.u32 1.1754944e-38, %v721
          %v723 = vsel %vm720, %v722, %v718
          %v724 = vmul.f32 1.0, %v723
          %v725 = vrcp.pop %v679
          %v726 = vmul.f32 %v679, %v725
          %v727 = vsub.f32 1.0, %v726
          %v728 = vmul.f32 %v725, %v727
          %v729 = vadd.f32 %v725, %v728
          %vm730 = vweird.f32 %v679
          %vm731 = vweird.f32 %v725
          %vm732 = vmor %vm730, %vm731
          %v733 = vsel %vm732, %v725, %v729
          %v734 = vand.u32 2147483647, %v679
          %vm735 = vcmp.eq.f32.partialorder %v734, 8.507059e+37
          %v736 = vand.u32 %v679, 2147483648
          %v737 = vor.u32 1.1754944e-38, %v736
          %v738 = vsel %vm735, %v737, %v733
          %v739 = vmul.f32 1.0, %v738
          %v740 = vmul.f32 %v653, %v694
          %v741 = vmul.f32 %v656, %v709
          %v742 = vmul.f32 %v659, %v724
          %v743 = vmul.f32 %v662, %v739
          %v744 = vld [vmem:[%s1 + $0x20] sm:$0xff]
          %v745 = vld [vmem:[%s1 + $0x28] sm:$0xff]
          %v746 = vld [vmem:[%s1 + $0x30] sm:$0xff]
          %748 = vset.pattern.permute.xlu0 0
          %749 = vperm.xlu0 %748, %v744
          %v750 = vpop.permute.xlu0 %749
          %753 = vset.pattern.permute.xlu0 0
          %754 = vperm.xlu0 %753, %v745
          %v755 = vpop.permute.xlu0 %754
          %758 = vset.pattern.permute.xlu0 0
          %759 = vperm.xlu0 %758, %v746
          %v760 = vpop.permute.xlu0 %759
          %v762 = vperm.slane %v518, 0
          %v763 = vsub.f32 %v750, %v762
          %v764 = vsub.f32 %v755, %v762
          %v765 = vsub.f32 %v760, %v762
          %v766 = vmul.f32 %v763, 7.875
          %v767 = vmul.f32 %v764, 7.875
          %v768 = vmul.f32 %v765, 7.875
          %v769 = vmul.f32 %v766, %v766
          %v770 = vmul.f32 %v767, %v767
          %v771 = vmul.f32 %v768, %v768
          %v772 = vadd.f32 %v769, 1.0
          %v773 = vadd.f32 %v770, 1.0
          %v774 = vadd.f32 %v771, 1.0
          %v775 = vrsqrt.pop %v772
          %v776 = vmul.f32 %v775, %v772
          %v777 = vmul.f32 %v776, %v775
          %v778 = vmul.f32 0.5, %v777
          %v779 = vsub.f32 1.5, %v778
          %v780 = vmul.f32 %v775, %v779
          %v781 = vmul.f32 %v772, %v780
          %vm782 = vcmp.eq.f32.partialorder %v772, inf
          %v783 = vsel %vm782, %v772, %v781
          %vm784 = vcmp.eq.f32.partialorder %v772, 0.0
          %v785 = vand.u32 %v772, 2147483648
          %v786 = vsel %vm784, %v785, %v783
          %v787 = vrsqrt.pop %v773
          %v788 = vmul.f32 %v787, %v773
          %v789 = vmul.f32 %v788, %v787
          %v790 = vmul.f32 0.5, %v789
          %v791 = vsub.f32 1.5, %v790
          %v792 = vmul.f32 %v787, %v791
          %v793 = vmul.f32 %v773, %v792
          %vm794 = vcmp.eq.f32.partialorder %v773, inf
          %v795 = vsel %vm794, %v773, %v793
          %vm796 = vcmp.eq.f32.partialorder %v773, 0.0
          %v797 = vand.u32 %v773, 2147483648
          %v798 = vsel %vm796, %v797, %v795
          %v799 = vrsqrt.pop %v774
          %v800 = vmul.f32 %v799, %v774
          %v801 = vmul.f32 %v800, %v799
          %v802 = vmul.f32 0.5, %v801
          %v803 = vsub.f32 1.5, %v802
          %v804 = vmul.f32 %v799, %v803
          %v805 = vmul.f32 %v774, %v804
          %vm806 = vcmp.eq.f32.partialorder %v774, inf
          %v807 = vsel %vm806, %v774, %v805
          %vm808 = vcmp.eq.f32.partialorder %v774, 0.0
          %v809 = vand.u32 %v774, 2147483648
          %v810 = vsel %vm808, %v809, %v807
          %s811 = scalar_lea.vmem [#allocation6], 256
          %v812 = vld [vmem:[%s811] sm:$0xff]
          %v813 = vld [vmem:[%s811 + $0x8] sm:$0xff]
          %v814 = vld [vmem:[%s811 + $0x10] sm:$0xff]
          %v815 = vld [vmem:[%s811 + $0x18] sm:$0xff]
          %v816 = vld [vmem:[%s811 + $0x20] sm:$0xff]
          %v817 = vld [vmem:[%s811 + $0x28] sm:$0xff]
          %v818 = vld [vmem:[%s811 + $0x30] sm:$0xff]
          %v819 = vld [vmem:[%s811 + $0x38] sm:$0xff]
          %v820 = vld [vmem:[%s811 + $0x40] sm:$0xff]
          %v821 = vld [vmem:[%s811 + $0x48] sm:$0xff]
          %v822 = vld [vmem:[%s811 + $0x50] sm:$0xff]
          %v823 = vld [vmem:[%s811 + $0x58] sm:$0xff]
          %v824 = vld [vmem:[%s811 + $0x60] sm:$0xff]
          %v825 = vld [vmem:[%s811 + $0x68] sm:$0xff]
          %v826 = vld [vmem:[%s811 + $0x70] sm:$0xff]
          %v827 = vld [vmem:[%s811 + $0x78] sm:$0xff]
          %v828 = vperm.slane %v521, 0
          %829 = vmatpush.msra.mxu0 %v827
          %830 = vmatpush.msra.mxu0 %v826
          %831 = vmatpush.msra.mxu0 %v825
          %832 = vmatpush.msra.mxu0 %v824
          %833 = vmatpush.msra.mxu0 %v823
          %834 = vmatpush.msra.mxu0 %v822
          %835 = vmatpush.msra.mxu0 %v821
          %836 = vmatpush.msra.mxu0 %v820
          %837 = vmatpush.msra.mxu0 %v819
          %838 = vmatpush.msra.mxu0 %v818
          %839 = vmatpush.msra.mxu0 %v817
          %840 = vmatpush.msra.mxu0 %v816
          %841 = vmatpush.msra.mxu0 %v815
          %842 = vmatpush.msra.mxu0 %v814
          %843 = vmatpush.msra.mxu0 %v813
          %844 = vmatpush.msra.mxu0 %v812
          %845 = vmatmul.f32.gmra.mxu0 %v786
          %v846 = vpop.f32.mrf.mxu0
          %v847 = vadd.f32 %v828, %v846
          %848 = vmatmul.f32.gmra.mxu0 %v798
          %v849 = vpop.f32.mrf.mxu0
          %v850 = vadd.f32 %v828, %v849
          %851 = vmatmul.f32.gmra.mxu0 %v810
          %v852 = vpop.f32.mrf.mxu0
          %v853 = vadd.f32 %v828, %v852
          %854 = vdwg.mxu0
          %v855 = vmax.f32 %v847, 0.0
          %v856 = vmax.f32 %v850, 0.0
          %v857 = vmax.f32 %v853, 0.0
          %vm858 = vcmp.ne.f32.partialorder %v847, %v847
          %vm859 = vcmp.ne.f32.partialorder %v850, %v850
          %vm860 = vcmp.ne.f32.partialorder %v853, %v853
          %v861 = vadd.f32 %v847, 0.0
          %v862 = vadd.f32 %v850, 0.0
          %v863 = vadd.f32 %v853, 0.0
          %v864 = vand.u32 2147483647, %v847
          %v865 = vand.u32 2147483647, %v850
          %v866 = vand.u32 2147483647, %v853
          %v867 = vsub.f32 0.0, %v864
          %v868 = vsub.f32 0.0, %v865
          %v869 = vsub.f32 0.0, %v866
          %v870 = vmul.f32 %v867, 1.442695
          %v871 = vpow.pop %v870
          %v872 = vmul.f32 %v868, 1.442695
          %v873 = vpow.pop %v872
          %v874 = vmul.f32 %v869, 1.442695
          %v875 = vpow.pop %v874
          %v876 = vadd.f32 %v871, 1.0
          %v877 = vlog2.pop %v876
          %v878 = vmul.f32 %v877, 0.6931472
          %v879 = vmul.f32 -0.5, %v871
          %v880 = vadd.f32 %v879, 1.0
          %v881 = vmul.f32 %v880, %v871
          %v882 = vand.u32 2147483647, %v871
          %vm883 = vcmp.lt.f32.partialorder %v882, 0.0004427343
          %v884 = vsel %vm883, %v881, %v878
          %v885 = vadd.f32 %v873, 1.0
          %v886 = vlog2.pop %v885
          %v887 = vmul.f32 %v886, 0.6931472
          %v888 = vmul.f32 -0.5, %v873
          %v889 = vadd.f32 %v888, 1.0
          %v890 = vmul.f32 %v889, %v873
          %v891 = vand.u32 2147483647, %v873
          %vm892 = vcmp.lt.f32.partialorder %v891, 0.0004427343
          %v893 = vsel %vm892, %v890, %v887
          %v894 = vadd.f32 %v875, 1.0
          %v895 = vlog2.pop %v894
          %v896 = vmul.f32 %v895, 0.6931472
          %v897 = vmul.f32 -0.5, %v875
          %v898 = vadd.f32 %v897, 1.0
          %v899 = vmul.f32 %v898, %v875
          %v900 = vand.u32 2147483647, %v875
          %vm901 = vcmp.lt.f32.partialorder %v900, 0.0004427343
          %v902 = vsel %vm901, %v899, %v896
          %v903 = vadd.f32 %v855, %v884
          %v904 = vadd.f32 %v856, %v893
          %v905 = vadd.f32 %v857, %v902
          %v906 = vsel %vm858, %v861, %v903
          %v907 = vsel %vm859, %v862, %v904
          %v908 = vsel %vm860, %v863, %v905
          %v909 = vperm.slane %v522, 0
          %v910 = vmul.f32 %v906, %v909
          %v911 = vmul.f32 %v907, %v909
          %v912 = vmul.f32 %v908, %v909
          %v913 = vperm.slane %v523, 0
          %v914 = vadd.f32 %v910, %v913
          %v915 = vadd.f32 %v911, %v913
          %v916 = vadd.f32 %v912, %v913
          %917 = vst [vmem:[#allocation3] sm:$0xff] %v740
          %918 = vst [vmem:[#allocation3 + $0x8] sm:$0xff] %v741
          %919 = vst [vmem:[#allocation3 + $0x10] sm:$0xff] %v742
          %920 = vst [vmem:[#allocation3 + $0x18] sm:$0xff] %v743
          %921 = vst [vmem:[#allocation3 + $0x20] sm:$0xff] %v914
          %922 = vst [vmem:[#allocation3 + $0x28] sm:$0xff] %v915
          %923 = vst [vmem:[#allocation3 + $0x30] sm:$0xff] %v916
          %v924 = vlaneseq
          %v925 = vand.u32 %v924, 127
          %v926 = vld [vmem:[%s3] sm:$0xff]
          %v927 = vld [vmem:[%s3 + $0x8] sm:$0xff]
          %v928 = vld [vmem:[%s3 + $0x10] sm:$0xff]
          %v929 = vld [vmem:[%s3 + $0x18] sm:$0xff]
          %v930 = vld [vmem:[%s3 + $0x20] sm:$0xff]
          %v931 = vld [vmem:[%s3 + $0x28] sm:$0xff]
          %v932 = vld [vmem:[%s3 + $0x30] sm:$0xff]
          %933 = vset.pattern.permute.xlu0 0
          %934 = vperm.xlu0 %933, %v926
          %v935 = vpop.permute.xlu0 %934
          %936 = vset.pattern.permute.xlu0 0
          %937 = vperm.xlu0 %936, %v927
          %v938 = vpop.permute.xlu0 %937
          %939 = vset.pattern.permute.xlu0 0
          %940 = vperm.xlu0 %939, %v928
          %v941 = vpop.permute.xlu0 %940
          %942 = vset.pattern.permute.xlu0 0
          %943 = vperm.xlu0 %942, %v929
          %v944 = vpop.permute.xlu0 %943
          %945 = vset.pattern.permute.xlu0 0
          %946 = vperm.xlu0 %945, %v930
          %v947 = vpop.permute.xlu0 %946
          %948 = vset.pattern.permute.xlu0 0
          %949 = vperm.xlu0 %948, %v931
          %v950 = vpop.permute.xlu0 %949
          %951 = vset.pattern.permute.xlu0 0
          %952 = vperm.xlu0 %951, %v932
          %v953 = vpop.permute.xlu0 %952
          %vm954 = vcmp.eq.s32.totalorder %v925, %v935
          %vm955 = vcmp.eq.s32.totalorder %v925, %v938
          %vm956 = vcmp.eq.s32.totalorder %v925, %v941
          %vm957 = vcmp.eq.s32.totalorder %v925, %v944
          %vm958 = vcmp.eq.s32.totalorder %v925, %v947
          %vm959 = vcmp.eq.s32.totalorder %v925, %v950
          %vm960 = vcmp.eq.s32.totalorder %v925, %v953
          %v961 = vld [vmem:[%s2] sm:$0xff]
          %v962 = vld [vmem:[%s2 + $0x8] sm:$0xff]
          %v963 = vld [vmem:[%s2 + $0x10] sm:$0xff]
          %v964 = vld [vmem:[%s2 + $0x18] sm:$0xff]
          %v965 = vld [vmem:[%s2 + $0x20] sm:$0xff]
          %v966 = vld [vmem:[%s2 + $0x28] sm:$0xff]
          %v967 = vld [vmem:[%s2 + $0x30] sm:$0xff]
          %v968 = vadd.s32 %v961, 16
          %v969 = vadd.s32 %v962, 16
          %v970 = vadd.s32 %v963, 16
          %v971 = vadd.s32 %v964, 16
          %v972 = vadd.s32 %v965, 16
          %v973 = vadd.s32 %v966, 16
          %v974 = vadd.s32 %v967, 16
          %975 = vset.pattern.permute.xlu0 0
          %976 = vperm.xlu0 %975, %v968
          %v977 = vpop.permute.xlu0 %976
          %978 = vset.pattern.permute.xlu0 0
          %979 = vperm.xlu0 %978, %v969
          %v980 = vpop.permute.xlu0 %979
          %981 = vset.pattern.permute.xlu0 0
          %982 = vperm.xlu0 %981, %v970
          %v983 = vpop.permute.xlu0 %982
          %984 = vset.pattern.permute.xlu0 0
          %985 = vperm.xlu0 %984, %v971
          %v986 = vpop.permute.xlu0 %985
          %987 = vset.pattern.permute.xlu0 0
          %988 = vperm.xlu0 %987, %v972
          %v989 = vpop.permute.xlu0 %988
          %990 = vset.pattern.permute.xlu0 0
          %991 = vperm.xlu0 %990, %v973
          %v992 = vpop.permute.xlu0 %991
          %993 = vset.pattern.permute.xlu0 0
          %994 = vperm.xlu0 %993, %v974
          %v995 = vpop.permute.xlu0 %994
          %vm996 = vcmp.eq.s32.totalorder %v925, %v977
          %vm997 = vcmp.eq.s32.totalorder %v925, %v980
          %vm998 = vcmp.eq.s32.totalorder %v925, %v983
          %vm999 = vcmp.eq.s32.totalorder %v925, %v986
          %vm1000 = vcmp.eq.s32.totalorder %v925, %v989
          %vm1001 = vcmp.eq.s32.totalorder %v925, %v992
          %vm1002 = vcmp.eq.s32.totalorder %v925, %v995
          %vm1003 = vmor %vm954, %vm996
          %vm1004 = vmor %vm955, %vm997
          %vm1005 = vmor %vm956, %vm998
          %vm1006 = vmor %vm957, %vm999
          %vm1007 = vmor %vm958, %vm1000
          %vm1008 = vmor %vm959, %vm1001
          %vm1009 = vmor %vm960, %vm1002
          %v1010 = vsel %vm1003, 1, 0
          %v1011 = vsel %vm1004, 1, 0
          %v1012 = vsel %vm1005, 1, 0
          %v1013 = vsel %vm1006, 1, 0
          %v1014 = vsel %vm1007, 1, 0
          %v1015 = vsel %vm1008, 1, 0
          %v1016 = vsel %vm1009, 1, 0
          %v1017 = vcvt.s32.f32 %v1010
          %v1018 = vcvt.s32.f32 %v1011
          %v1019 = vcvt.s32.f32 %v1012
          %v1020 = vcvt.s32.f32 %v1013
          %v1021 = vcvt.s32.f32 %v1014
          %v1022 = vcvt.s32.f32 %v1015
          %v1023 = vcvt.s32.f32 %v1016
          %vm1024 = vcmask 261120
          %1025 = vst.msk [vmem:[#allocation4] sm:$0xff] %vm1024, %v1017
          %1026 = vst.msk [vmem:[#allocation4 + $0x8] sm:$0xff] %vm1024, %v1018
          %1027 = vst.msk [vmem:[#allocation4 + $0x10] sm:$0xff] %vm1024, %v1019
          %1028 = vst.msk [vmem:[#allocation4 + $0x18] sm:$0xff] %vm1024, %v1020
          %1029 = vst.msk [vmem:[#allocation4 + $0x20] sm:$0xff] %vm1024, %v1021
          %1030 = vst.msk [vmem:[#allocation4 + $0x28] sm:$0xff] %vm1024, %v1022
          %1031 = vst.msk [vmem:[#allocation4 + $0x30] sm:$0xff] %vm1024, %v1023
          %v1032 = vlaneseq
          %v1033 = vshrl.u32 %v1032, 7
          %v1034 = vadd.s32 %v1033, 8
          %v1035 = vld [vmem:[%s4] sm:$0x1]
          %v1036 = vperm.slane %v1035, 0
          %vm1037 = vcmp.eq.s32.totalorder %v1033, %v1036
          %vm1038 = vcmp.eq.s32.totalorder %v1034, %v1036
          %v1039 = vsel %vm1037, 1, 0
          %v1040 = vsel %vm1038, 1, 0
          %v1041 = vcvt.s32.f32 %v1039
          %v1042 = vcvt.s32.f32 %v1040
          %vm1043 = vcmask 457728
          %1044 = vst.msk [vmem:[#allocation5] sm:$0xff] %vm1043, %v1041
          %1045 = vst.msk [vmem:[#allocation5 + $0x8] sm:$0xff] %vm1043, %v1042
        $region84: #{tpu_custom_call.1} parent=63 // pred_fallthru
          _
        %v1046 = vld [vmem:[%s512] sm:$0x77]
        %v1047 = vld [vmem:[#allocation2] sm:$0xff]
        %v1048 = vld [vmem:[#allocation2 + $0x8] sm:$0xff]
        %v1049 = vld [vmem:[#allocation3] sm:$0xff]
        %v1050 = vld [vmem:[#allocation3 + $0x8] sm:$0xff]
        %v1051 = vld [vmem:[#allocation3 + $0x10] sm:$0xff]
        %v1052 = vld [vmem:[#allocation3 + $0x18] sm:$0xff]
        %v1053 = vld [vmem:[#allocation3 + $0x20] sm:$0xff]
        %v1054 = vld [vmem:[#allocation3 + $0x28] sm:$0xff]
        %v1055 = vld [vmem:[#allocation3 + $0x30] sm:$0xff]
        %v1056 = vld [vmem:[%s438] sm:$0xff]
        %v1057 = vld [vmem:[%s438 + $0x8] sm:$0xff]
        %v1058 = vld [vmem:[%s438 + $0x10] sm:$0xff]
        %v1059 = vld [vmem:[%s438 + $0x18] sm:$0xff]
        %v1060 = vld [vmem:[%s438 + $0x20] sm:$0xff]
        %v1061 = vld [vmem:[%s438 + $0x28] sm:$0xff]
        %v1062 = vld [vmem:[%s438 + $0x30] sm:$0xff]
        %v1063 = vld [vmem:[%s438 + $0x38] sm:$0xff]
        %v1064 = vld [vmem:[%s438 + $0x40] sm:$0xff]
        %v1065 = vld [vmem:[%s438 + $0x48] sm:$0xff]
        %v1066 = vld [vmem:[%s438 + $0x50] sm:$0xff]
        %v1067 = vld [vmem:[%s438 + $0x58] sm:$0xff]
        %v1068 = vld [vmem:[%s438 + $0x60] sm:$0xff]
        %v1069 = vld [vmem:[%s438 + $0x68] sm:$0xff]
        %v1070 = vld [vmem:[%s438 + $0x70] sm:$0xff]
        %v1071 = vld [vmem:[%s438 + $0x78] sm:$0xff]
        %v1072 = vld [vmem:[%s438 + $0x80] sm:$0xff]
        %v1073 = vld [vmem:[%s438 + $0x88] sm:$0xff]
        %v1074 = vld [vmem:[%s438 + $0x90] sm:$0xff]
        %v1075 = vld [vmem:[%s438 + $0x98] sm:$0xff]
        %v1076 = vld [vmem:[%s438 + $0xa0] sm:$0xff]
        %v1077 = vld [vmem:[%s438 + $0xa8] sm:$0xff]
        %v1078 = vld [vmem:[%s438 + $0xb0] sm:$0xff]
        %v1079 = vld [vmem:[%s438 + $0xb8] sm:$0xff]
        %v1080 = vld [vmem:[%s438 + $0xc0] sm:$0xff]
        %v1081 = vld [vmem:[%s438 + $0xc8] sm:$0xff]
        %v1082 = vld [vmem:[%s438 + $0xd0] sm:$0xff]
        %v1083 = vld [vmem:[%s438 + $0xd8] sm:$0xff]
        %v1084 = vld [vmem:[%s438 + $0xe0] sm:$0xff]
        %v1085 = vld [vmem:[%s438 + $0xe8] sm:$0xff]
        %v1086 = vld [vmem:[%s438 + $0xf0] sm:$0xff]
        %v1087 = vld [vmem:[%s438 + $0xf8] sm:$0xff]
        %v1088 = vld [vmem:[%s438 + $0x100] sm:$0xff]
        %v1089 = vld [vmem:[%s438 + $0x108] sm:$0xff]
        %v1090 = vld [vmem:[%s438 + $0x110] sm:$0xff]
        %v1091 = vld [vmem:[%s438 + $0x118] sm:$0xff]
        %v1092 = vld [vmem:[%s438 + $0x120] sm:$0xff]
        %v1093 = vld [vmem:[%s438 + $0x128] sm:$0xff]
        %v1094 = vld [vmem:[%s438 + $0x130] sm:$0xff]
        %v1095 = vld [vmem:[%s438 + $0x138] sm:$0xff]
        %v1096 = vld [vmem:[%s438 + $0x140] sm:$0xff]
        %v1097 = vld [vmem:[%s438 + $0x148] sm:$0xff]
        %v1098 = vld [vmem:[%s438 + $0x150] sm:$0xff]
        %v1099 = vld [vmem:[%s438 + $0x158] sm:$0xff]
        %v1100 = vld [vmem:[%s438 + $0x160] sm:$0xff]
        %v1101 = vld [vmem:[%s438 + $0x168] sm:$0xff]
        %v1102 = vld [vmem:[%s438 + $0x170] sm:$0xff]
        %v1103 = vld [vmem:[%s438 + $0x178] sm:$0xff]
        %v1104 = vld [vmem:[%s438 + $0x180] sm:$0xff]
        %v1105 = vld [vmem:[%s438 + $0x188] sm:$0xff]
        %v1106 = vld [vmem:[%s438 + $0x190] sm:$0xff]
        %v1107 = vld [vmem:[%s438 + $0x198] sm:$0xff]
        %v1108 = vld [vmem:[%s438 + $0x1a0] sm:$0xff]
        %v1109 = vld [vmem:[%s438 + $0x1a8] sm:$0xff]
        %v1110 = vld [vmem:[%s438 + $0x1b0] sm:$0xff]
        %v1111 = vld [vmem:[%s438 + $0x1b8] sm:$0xff]
        %v1112 = vld [vmem:[%s438 + $0x1c0] sm:$0xff]
        %v1113 = vld [vmem:[%s438 + $0x1c8] sm:$0xff]
        %v1114 = vld [vmem:[%s438 + $0x1d0] sm:$0xff]
        %v1115 = vld [vmem:[%s438 + $0x1d8] sm:$0xff]
        %v1116 = vld [vmem:[%s438 + $0x1e0] sm:$0xff]
        %v1117 = vld [vmem:[%s438 + $0x1e8] sm:$0xff]
        %v1118 = vld [vmem:[%s438 + $0x1f0] sm:$0xff]
        %v1119 = vld [vmem:[%s438 + $0x1f8] sm:$0xff]
        %1120 = vmatpush.msra.mxu0 %v1116
        %1121 = vmatpush.msra.mxu0 %v1112
        %1122 = vmatpush.msra.mxu0 %v1108
        %1123 = vmatpush.msra.mxu0 %v1104
        %1124 = vmatpush.msra.mxu0 %v1100
        %1125 = vmatpush.msra.mxu0 %v1096
        %1126 = vmatpush.msra.mxu0 %v1092
        %1127 = vmatpush.msra.mxu0 %v1088
        %1128 = vmatpush.msra.mxu0 %v1084
        %1129 = vmatpush.msra.mxu0 %v1080
        %1130 = vmatpush.msra.mxu0 %v1076
        %1131 = vmatpush.msra.mxu0 %v1072
        %1132 = vmatpush.msra.mxu0 %v1068
        %1133 = vmatpush.msra.mxu0 %v1064
        %1134 = vmatpush.msra.mxu0 %v1060
        %1135 = vmatpush.msra.mxu0 %v1056
        %1136 = vmatmul.f32.gmra.mxu0 %v1047
        %v1137 = vpop.f32.mrf.mxu0
        %v1138 = vadd.f32 0.0, %v1137
        %1139 = vmatmul.f32.gmra.mxu0 %v1048
        %v1140 = vpop.f32.mrf.mxu0
        %v1141 = vadd.f32 0.0, %v1140
        %1142 = vdwg.mxu0
        %1143 = vmatpush.msra.mxu0 %v1117
        %1144 = vmatpush.msra.mxu0 %v1113
        %1145 = vmatpush.msra.mxu0 %v1109
        %1146 = vmatpush.msra.mxu0 %v1105
        %1147 = vmatpush.msra.mxu0 %v1101
        %1148 = vmatpush.msra.mxu0 %v1097
        %1149 = vmatpush.msra.mxu0 %v1093
        %1150 = vmatpush.msra.mxu0 %v1089
        %1151 = vmatpush.msra.mxu0 %v1085
        %1152 = vmatpush.msra.mxu0 %v1081
        %1153 = vmatpush.msra.mxu0 %v1077
        %1154 = vmatpush.msra.mxu0 %v1073
        %1155 = vmatpush.msra.mxu0 %v1069
        %1156 = vmatpush.msra.mxu0 %v1065
        %1157 = vmatpush.msra.mxu0 %v1061
        %1158 = vmatpush.msra.mxu0 %v1057
        %1159 = vmatmul.f32.gmra.mxu0 %v1047
        %v1160 = vpop.f32.mrf.mxu0
        %v1161 = vadd.f32 0.0, %v1160
        %1162 = vmatmul.f32.gmra.mxu0 %v1048
        %v1163 = vpop.f32.mrf.mxu0
        %v1164 = vadd.f32 0.0, %v1163
        %1165 = vdwg.mxu0
        %1166 = vmatpush.msra.mxu0 %v1118
        %1167 = vmatpush.msra.mxu0 %v1114
        %1168 = vmatpush.msra.mxu0 %v1110
        %1169 = vmatpush.msra.mxu0 %v1106
        %1170 = vmatpush.msra.mxu0 %v1102
        %1171 = vmatpush.msra.mxu0 %v1098
        %1172 = vmatpush.msra.mxu0 %v1094
        %1173 = vmatpush.msra.mxu0 %v1090
        %1174 = vmatpush.msra.mxu0 %v1086
        %1175 = vmatpush.msra.mxu0 %v1082
        %1176 = vmatpush.msra.mxu0 %v1078
        %1177 = vmatpush.msra.mxu0 %v1074
        %1178 = vmatpush.msra.mxu0 %v1070
        %1179 = vmatpush.msra.mxu0 %v1066
        %1180 = vmatpush.msra.mxu0 %v1062
        %1181 = vmatpush.msra.mxu0 %v1058
        %1182 = vmatmul.f32.gmra.mxu0 %v1047
        %v1183 = vpop.f32.mrf.mxu0
        %v1184 = vadd.f32 0.0, %v1183
        %1185 = vmatmul.f32.gmra.mxu0 %v1048
        %v1186 = vpop.f32.mrf.mxu0
        %v1187 = vadd.f32 0.0, %v1186
        %1188 = vdwg.mxu0
        %1189 = vmatpush.msra.mxu0 %v1119
        %1190 = vmatpush.msra.mxu0 %v1115
        %1191 = vmatpush.msra.mxu0 %v1111
        %1192 = vmatpush.msra.mxu0 %v1107
        %1193 = vmatpush.msra.mxu0 %v1103
        %1194 = vmatpush.msra.mxu0 %v1099
        %1195 = vmatpush.msra.mxu0 %v1095
        %1196 = vmatpush.msra.mxu0 %v1091
        %1197 = vmatpush.msra.mxu0 %v1087
        %1198 = vmatpush.msra.mxu0 %v1083
        %1199 = vmatpush.msra.mxu0 %v1079
        %1200 = vmatpush.msra.mxu0 %v1075
        %1201 = vmatpush.msra.mxu0 %v1071
        %1202 = vmatpush.msra.mxu0 %v1067
        %1203 = vmatpush.msra.mxu0 %v1063
        %1204 = vmatpush.msra.mxu0 %v1059
        %1205 = vmatmul.f32.gmra.mxu0 %v1047
        %v1206 = vpop.f32.mrf.mxu0
        %v1207 = vadd.f32 0.0, %v1206
        %1208 = vmatmul.f32.gmra.mxu0 %v1048
        %v1209 = vpop.f32.mrf.mxu0
        %v1210 = vadd.f32 0.0, %v1209
        %1211 = vdwg.mxu0
        %v1212 = vld [vmem:[%s448] sm:$0xff]
        %v1213 = vld [vmem:[%s448 + $0x8] sm:$0xff]
        %v1214 = vld [vmem:[%s448 + $0x10] sm:$0xff]
        %v1215 = vld [vmem:[%s448 + $0x18] sm:$0xff]
        %v1216 = vld [vmem:[%s448 + $0x20] sm:$0xff]
        %v1217 = vld [vmem:[%s448 + $0x28] sm:$0xff]
        %v1218 = vld [vmem:[%s448 + $0x30] sm:$0xff]
        %v1219 = vld [vmem:[%s448 + $0x38] sm:$0xff]
        %v1220 = vld [vmem:[%s448 + $0x40] sm:$0xff]
        %v1221 = vld [vmem:[%s448 + $0x48] sm:$0xff]
        %v1222 = vld [vmem:[%s448 + $0x50] sm:$0xff]
        %v1223 = vld [vmem:[%s448 + $0x58] sm:$0xff]
        %v1224 = vld [vmem:[%s448 + $0x60] sm:$0xff]
        %v1225 = vld [vmem:[%s448 + $0x68] sm:$0xff]
        %v1226 = vld [vmem:[%s448 + $0x70] sm:$0xff]
        %v1227 = vld [vmem:[%s448 + $0x78] sm:$0xff]
        %v1228 = vld [vmem:[%s448 + $0x80] sm:$0xff]
        %v1229 = vld [vmem:[%s448 + $0x88] sm:$0xff]
        %v1230 = vld [vmem:[%s448 + $0x90] sm:$0xff]
        %v1231 = vld [vmem:[%s448 + $0x98] sm:$0xff]
        %v1232 = vld [vmem:[%s448 + $0xa0] sm:$0xff]
        %v1233 = vld [vmem:[%s448 + $0xa8] sm:$0xff]
        %v1234 = vld [vmem:[%s448 + $0xb0] sm:$0xff]
        %v1235 = vld [vmem:[%s448 + $0xb8] sm:$0xff]
        %v1236 = vld [vmem:[%s448 + $0xc0] sm:$0xff]
        %v1237 = vld [vmem:[%s448 + $0xc8] sm:$0xff]
        %v1238 = vld [vmem:[%s448 + $0xd0] sm:$0xff]
        %v1239 = vld [vmem:[%s448 + $0xd8] sm:$0xff]
        %v1240 = vld [vmem:[%s448 + $0xe0] sm:$0xff]
        %v1241 = vld [vmem:[%s448 + $0xe8] sm:$0xff]
        %v1242 = vld [vmem:[%s448 + $0xf0] sm:$0xff]
        %v1243 = vld [vmem:[%s448 + $0xf8] sm:$0xff]
        %v1245 = vperm.slane %v1046, 0
        %v1246 = vperm.slane %v1046, 4
        %v1249 = vperm.slane %v1245, 0
        %v1250 = vperm.slane %v1246, 0
        %1251 = vmatpush.msra.mxu0 %v1242
        %1252 = vmatpush.msra.mxu0 %v1240
        %1253 = vmatpush.msra.mxu0 %v1238
        %1254 = vmatpush.msra.mxu0 %v1236
        %1255 = vmatpush.msra.mxu0 %v1234
        %1256 = vmatpush.msra.mxu0 %v1232
        %1257 = vmatpush.msra.mxu0 %v1230
        %1258 = vmatpush.msra.mxu0 %v1228
        %1259 = vmatpush.msra.mxu0 %v1226
        %1260 = vmatpush.msra.mxu0 %v1224
        %1261 = vmatpush.msra.mxu0 %v1222
        %1262 = vmatpush.msra.mxu0 %v1220
        %1263 = vmatpush.msra.mxu0 %v1218
        %1264 = vmatpush.msra.mxu0 %v1216
        %1265 = vmatpush.msra.mxu0 %v1214
        %1266 = vmatpush.msra.mxu0 %v1212
        %1267 = vmatmul.f32.gmra.mxu0 %v1049
        %v1268 = vpop.f32.mrf.mxu0
        %v1269 = vadd.f32 %v1249, %v1268
        %1270 = vmatmul.f32.gmra.mxu0 %v1050
        %v1271 = vpop.f32.mrf.mxu0
        %v1272 = vadd.f32 %v1249, %v1271
        %1273 = vmatmul.f32.gmra.mxu0 %v1051
        %v1274 = vpop.f32.mrf.mxu0
        %v1275 = vadd.f32 %v1249, %v1274
        %1276 = vmatmul.f32.gmra.mxu0 %v1052
        %v1277 = vpop.f32.mrf.mxu0
        %v1278 = vadd.f32 %v1249, %v1277
        %1279 = vmatmul.f32.gmra.mxu0 %v1053
        %v1280 = vpop.f32.mrf.mxu0
        %v1281 = vadd.f32 %v1249, %v1280
        %1282 = vmatmul.f32.gmra.mxu0 %v1054
        %v1283 = vpop.f32.mrf.mxu0
        %v1284 = vadd.f32 %v1249, %v1283
        %1285 = vmatmul.f32.gmra.mxu0 %v1055
        %v1286 = vpop.f32.mrf.mxu0
        %v1287 = vadd.f32 %v1249, %v1286
        %1288 = vdwg.mxu0
        %1289 = vmatpush.msra.mxu0 %v1243
        %1290 = vmatpush.msra.mxu0 %v1241
        %1291 = vmatpush.msra.mxu0 %v1239
        %1292 = vmatpush.msra.mxu0 %v1237
        %1293 = vmatpush.msra.mxu0 %v1235
        %1294 = vmatpush.msra.mxu0 %v1233
        %1295 = vmatpush.msra.mxu0 %v1231
        %1296 = vmatpush.msra.mxu0 %v1229
        %1297 = vmatpush.msra.mxu0 %v1227
        %1298 = vmatpush.msra.mxu0 %v1225
        %1299 = vmatpush.msra.mxu0 %v1223
        %1300 = vmatpush.msra.mxu0 %v1221
        %1301 = vmatpush.msra.mxu0 %v1219
        %1302 = vmatpush.msra.mxu0 %v1217
        %1303 = vmatpush.msra.mxu0 %v1215
        %1304 = vmatpush.msra.mxu0 %v1213
        %1305 = vmatmul.f32.gmra.mxu0 %v1049
        %v1306 = vpop.f32.mrf.mxu0
        %v1307 = vadd.f32 %v1250, %v1306
        %1308 = vmatmul.f32.gmra.mxu0 %v1050
        %v1309 = vpop.f32.mrf.mxu0
        %v1310 = vadd.f32 %v1250, %v1309
        %1311 = vmatmul.f32.gmra.mxu0 %v1051
        %v1312 = vpop.f32.mrf.mxu0
        %v1313 = vadd.f32 %v1250, %v1312
        %1314 = vmatmul.f32.gmra.mxu0 %v1052
        %v1315 = vpop.f32.mrf.mxu0
        %v1316 = vadd.f32 %v1250, %v1315
        %1317 = vmatmul.f32.gmra.mxu0 %v1053
        %v1318 = vpop.f32.mrf.mxu0
        %v1319 = vadd.f32 %v1250, %v1318
        %1320 = vmatmul.f32.gmra.mxu0 %v1054
        %v1321 = vpop.f32.mrf.mxu0
        %v1322 = vadd.f32 %v1250, %v1321
        %1323 = vmatmul.f32.gmra.mxu0 %v1055
        %v1324 = vpop.f32.mrf.mxu0
        %v1325 = vadd.f32 %v1250, %v1324
        %1326 = vdwg.mxu0
        %v1327 = vld [vmem:[#allocation4] sm:$0xff]
        %v1328 = vld [vmem:[#allocation4 + $0x8] sm:$0xff]
        %v1329 = vld [vmem:[#allocation4 + $0x10] sm:$0xff]
        %v1330 = vld [vmem:[#allocation4 + $0x18] sm:$0xff]
        %v1331 = vld [vmem:[#allocation4 + $0x20] sm:$0xff]
        %v1332 = vld [vmem:[#allocation4 + $0x28] sm:$0xff]
        %v1333 = vld [vmem:[#allocation4 + $0x30] sm:$0xff]
        %vm1334 = vcmask 261120
        %v1336 = vsel %vm1334, %v1327, 0
        %v1339 = vsel %vm1334, %v1328, 0
        %v1342 = vsel %vm1334, %v1329, 0
        %v1345 = vsel %vm1334, %v1330, 0
        %v1348 = vsel %vm1334, %v1331, 0
        %v1351 = vsel %vm1334, %v1332, 0
        %v1354 = vsel %vm1334, %v1333, 0
        %1356 = vmatpush.msra.mxu0 0.0
        %1357 = vmatpush.msra.mxu0 0.0
        %1358 = vmatpush.msra.mxu0 0.0
        %1359 = vmatpush.msra.mxu0 0.0
        %1360 = vmatpush.msra.mxu0 0.0
        %1361 = vmatpush.msra.mxu0 0.0
        %1362 = vmatpush.msra.mxu0 0.0
        %1363 = vmatpush.msra.mxu0 0.0
        %1364 = vmatpush.msra.mxu0 0.0
        %1365 = vmatpush.msra.mxu0 0.0
        %1366 = vmatpush.msra.mxu0 0.0
        %1367 = vmatpush.msra.mxu0 0.0
        %1368 = vmatpush.msra.mxu0 %v1187
        %1369 = vmatpush.msra.mxu0 %v1184
        %1370 = vmatpush.msra.mxu0 %v1141
        %1371 = vmatpush.msra.mxu0 %v1138
        %1372 = vmatmul.f32.gmra.mxu0 %v1336
        %v1373 = vpop.f32.mrf.mxu0
        %v1374 = vadd.f32 %v1269, %v1373
        %1375 = vmatmul.f32.gmra.mxu0 %v1339
        %v1376 = vpop.f32.mrf.mxu0
        %v1377 = vadd.f32 %v1272, %v1376
        %1378 = vmatmul.f32.gmra.mxu0 %v1342
        %v1379 = vpop.f32.mrf.mxu0
        %v1380 = vadd.f32 %v1275, %v1379
        %1381 = vmatmul.f32.gmra.mxu0 %v1345
        %v1382 = vpop.f32.mrf.mxu0
        %v1383 = vadd.f32 %v1278, %v1382
        %1384 = vmatmul.f32.gmra.mxu0 %v1348
        %v1385 = vpop.f32.mrf.mxu0
        %v1386 = vadd.f32 %v1281, %v1385
        %1387 = vmatmul.f32.gmra.mxu0 %v1351
        %v1388 = vpop.f32.mrf.mxu0
        %v1389 = vadd.f32 %v1284, %v1388
        %1390 = vmatmul.f32.gmra.mxu0 %v1354
        %v1391 = vpop.f32.mrf.mxu0
        %v1392 = vadd.f32 %v1287, %v1391
        %1393 = vdwg.mxu0
        %1394 = vmatpush.msra.mxu0 0.0
        %1395 = vmatpush.msra.mxu0 0.0
        %1396 = vmatpush.msra.mxu0 0.0
        %1397 = vmatpush.msra.mxu0 0.0
        %1398 = vmatpush.msra.mxu0 0.0
        %1399 = vmatpush.msra.mxu0 0.0
        %1400 = vmatpush.msra.mxu0 0.0
        %1401 = vmatpush.msra.mxu0 0.0
        %1402 = vmatpush.msra.mxu0 0.0
        %1403 = vmatpush.msra.mxu0 0.0
        %1404 = vmatpush.msra.mxu0 0.0
        %1405 = vmatpush.msra.mxu0 0.0
        %1406 = vmatpush.msra.mxu0 %v1210
        %1407 = vmatpush.msra.mxu0 %v1207
        %1408 = vmatpush.msra.mxu0 %v1164
        %1409 = vmatpush.msra.mxu0 %v1161
        %1410 = vmatmul.f32.gmra.mxu0 %v1336
        %v1411 = vpop.f32.mrf.mxu0
        %v1412 = vadd.f32 %v1307, %v1411
        %1413 = vmatmul.f32.gmra.mxu0 %v1339
        %v1414 = vpop.f32.mrf.mxu0
        %v1415 = vadd.f32 %v1310, %v1414
        %1416 = vmatmul.f32.gmra.mxu0 %v1342
        %v1417 = vpop.f32.mrf.mxu0
        %v1418 = vadd.f32 %v1313, %v1417
        %1419 = vmatmul.f32.gmra.mxu0 %v1345
        %v1420 = vpop.f32.mrf.mxu0
        %v1421 = vadd.f32 %v1316, %v1420
        %1422 = vmatmul.f32.gmra.mxu0 %v1348
        %v1423 = vpop.f32.mrf.mxu0
        %v1424 = vadd.f32 %v1319, %v1423
        %1425 = vmatmul.f32.gmra.mxu0 %v1351
        %v1426 = vpop.f32.mrf.mxu0
        %v1427 = vadd.f32 %v1322, %v1426
        %1428 = vmatmul.f32.gmra.mxu0 %v1354
        %v1429 = vpop.f32.mrf.mxu0
        %v1430 = vadd.f32 %v1325, %v1429
        %1431 = vdwg.mxu0
        %v1432 = vxor.u32 %v1374, 2147483648
        %v1433 = vxor.u32 %v1412, 2147483648
        %v1434 = vxor.u32 %v1377, 2147483648
        %v1435 = vxor.u32 %v1415, 2147483648
        %v1436 = vxor.u32 %v1380, 2147483648
        %v1437 = vxor.u32 %v1418, 2147483648
        %v1438 = vxor.u32 %v1383, 2147483648
        %v1439 = vxor.u32 %v1421, 2147483648
        %v1440 = vxor.u32 %v1386, 2147483648
        %v1441 = vxor.u32 %v1424, 2147483648
        %v1442 = vxor.u32 %v1389, 2147483648
        %v1443 = vxor.u32 %v1427, 2147483648
        %v1444 = vxor.u32 %v1392, 2147483648
        %v1445 = vxor.u32 %v1430, 2147483648
        %v1446 = vmul.f32 %v1432, 1.442695
        %v1447 = vpow.pop %v1446
        %v1448 = vmul.f32 %v1433, 1.442695
        %v1449 = vpow.pop %v1448
        %v1450 = vmul.f32 %v1434, 1.442695
        %v1451 = vpow.pop %v1450
        %v1452 = vmul.f32 %v1435, 1.442695
        %v1453 = vpow.pop %v1452
        %v1454 = vmul.f32 %v1436, 1.442695
        %v1455 = vpow.pop %v1454
        %v1456 = vmul.f32 %v1437, 1.442695
        %v1457 = vpow.pop %v1456
        %v1458 = vmul.f32 %v1438, 1.442695
        %v1459 = vpow.pop %v1458
        %v1460 = vmul.f32 %v1439, 1.442695
        %v1461 = vpow.pop %v1460
        %v1462 = vmul.f32 %v1440, 1.442695
        %v1463 = vpow.pop %v1462
        %v1464 = vmul.f32 %v1441, 1.442695
        %v1465 = vpow.pop %v1464
        %v1466 = vmul.f32 %v1442, 1.442695
        %v1467 = vpow.pop %v1466
        %v1468 = vmul.f32 %v1443, 1.442695
        %v1469 = vpow.pop %v1468
        %v1470 = vmul.f32 %v1444, 1.442695
        %v1471 = vpow.pop %v1470
        %v1472 = vmul.f32 %v1445, 1.442695
        %v1473 = vpow.pop %v1472
        %v1474 = vadd.f32 %v1447, 1.0
        %v1475 = vadd.f32 %v1449, 1.0
        %v1476 = vadd.f32 %v1451, 1.0
        %v1477 = vadd.f32 %v1453, 1.0
        %v1478 = vadd.f32 %v1455, 1.0
        %v1479 = vadd.f32 %v1457, 1.0
        %v1480 = vadd.f32 %v1459, 1.0
        %v1481 = vadd.f32 %v1461, 1.0
        %v1482 = vadd.f32 %v1463, 1.0
        %v1483 = vadd.f32 %v1465, 1.0
        %v1484 = vadd.f32 %v1467, 1.0
        %v1485 = vadd.f32 %v1469, 1.0
        %v1486 = vadd.f32 %v1471, 1.0
        %v1487 = vadd.f32 %v1473, 1.0
        %v1488 = vrcp.pop %v1474
        %v1489 = vmul.f32 %v1474, %v1488
        %v1490 = vsub.f32 1.0, %v1489
        %v1491 = vmul.f32 %v1488, %v1490
        %v1492 = vadd.f32 %v1488, %v1491
        %vm1493 = vweird.f32 %v1474
        %vm1494 = vweird.f32 %v1488
        %vm1495 = vmor %vm1493, %vm1494
        %v1496 = vsel %vm1495, %v1488, %v1492
        %v1497 = vand.u32 2147483647, %v1474
        %vm1498 = vcmp.eq.f32.partialorder %v1497, 8.507059e+37
        %v1499 = vand.u32 %v1474, 2147483648
        %v1500 = vor.u32 1.1754944e-38, %v1499
        %v1501 = vsel %vm1498, %v1500, %v1496
        %v1502 = vmul.f32 1.0, %v1501
        %v1503 = vrcp.pop %v1475
        %v1504 = vmul.f32 %v1475, %v1503
        %v1505 = vsub.f32 1.0, %v1504
        %v1506 = vmul.f32 %v1503, %v1505
        %v1507 = vadd.f32 %v1503, %v1506
        %vm1508 = vweird.f32 %v1475
        %vm1509 = vweird.f32 %v1503
        %vm1510 = vmor %vm1508, %vm1509
        %v1511 = vsel %vm1510, %v1503, %v1507
        %v1512 = vand.u32 2147483647, %v1475
        %vm1513 = vcmp.eq.f32.partialorder %v1512, 8.507059e+37
        %v1514 = vand.u32 %v1475, 2147483648
        %v1515 = vor.u32 1.1754944e-38, %v1514
        %v1516 = vsel %vm1513, %v1515, %v1511
        %v1517 = vmul.f32 1.0, %v1516
        %v1518 = vrcp.pop %v1476
        %v1519 = vmul.f32 %v1476, %v1518
        %v1520 = vsub.f32 1.0, %v1519
        %v1521 = vmul.f32 %v1518, %v1520
        %v1522 = vadd.f32 %v1518, %v1521
        %vm1523 = vweird.f32 %v1476
        %vm1524 = vweird.f32 %v1518
        %vm1525 = vmor %vm1523, %vm1524
        %v1526 = vsel %vm1525, %v1518, %v1522
        %v1527 = vand.u32 2147483647, %v1476
        %vm1528 = vcmp.eq.f32.partialorder %v1527, 8.507059e+37
        %v1529 = vand.u32 %v1476, 2147483648
        %v1530 = vor.u32 1.1754944e-38, %v1529
        %v1531 = vsel %vm1528, %v1530, %v1526
        %v1532 = vmul.f32 1.0, %v1531
        %v1533 = vrcp.pop %v1477
        %v1534 = vmul.f32 %v1477, %v1533
        %v1535 = vsub.f32 1.0, %v1534
        %v1536 = vmul.f32 %v1533, %v1535
        %v1537 = vadd.f32 %v1533, %v1536
        %vm1538 = vweird.f32 %v1477
        %vm1539 = vweird.f32 %v1533
        %vm1540 = vmor %vm1538, %vm1539
        %v1541 = vsel %vm1540, %v1533, %v1537
        %v1542 = vand.u32 2147483647, %v1477
        %vm1543 = vcmp.eq.f32.partialorder %v1542, 8.507059e+37
        %v1544 = vand.u32 %v1477, 2147483648
        %v1545 = vor.u32 1.1754944e-38, %v1544
        %v1546 = vsel %vm1543, %v1545, %v1541
        %v1547 = vmul.f32 1.0, %v1546
        %v1548 = vrcp.pop %v1478
        %v1549 = vmul.f32 %v1478, %v1548
        %v1550 = vsub.f32 1.0, %v1549
        %v1551 = vmul.f32 %v1548, %v1550
        %v1552 = vadd.f32 %v1548, %v1551
        %vm1553 = vweird.f32 %v1478
        %vm1554 = vweird.f32 %v1548
        %vm1555 = vmor %vm1553, %vm1554
        %v1556 = vsel %vm1555, %v1548, %v1552
        %v1557 = vand.u32 2147483647, %v1478
        %vm1558 = vcmp.eq.f32.partialorder %v1557, 8.507059e+37
        %v1559 = vand.u32 %v1478, 2147483648
        %v1560 = vor.u32 1.1754944e-38, %v1559
        %v1561 = vsel %vm1558, %v1560, %v1556
        %v1562 = vmul.f32 1.0, %v1561
        %v1563 = vrcp.pop %v1479
        %v1564 = vmul.f32 %v1479, %v1563
        %v1565 = vsub.f32 1.0, %v1564
        %v1566 = vmul.f32 %v1563, %v1565
        %v1567 = vadd.f32 %v1563, %v1566
        %vm1568 = vweird.f32 %v1479
        %vm1569 = vweird.f32 %v1563
        %vm1570 = vmor %vm1568, %vm1569
        %v1571 = vsel %vm1570, %v1563, %v1567
        %v1572 = vand.u32 2147483647, %v1479
        %vm1573 = vcmp.eq.f32.partialorder %v1572, 8.507059e+37
        %v1574 = vand.u32 %v1479, 2147483648
        %v1575 = vor.u32 1.1754944e-38, %v1574
        %v1576 = vsel %vm1573, %v1575, %v1571
        %v1577 = vmul.f32 1.0, %v1576
        %v1578 = vrcp.pop %v1480
        %v1579 = vmul.f32 %v1480, %v1578
        %v1580 = vsub.f32 1.0, %v1579
        %v1581 = vmul.f32 %v1578, %v1580
        %v1582 = vadd.f32 %v1578, %v1581
        %vm1583 = vweird.f32 %v1480
        %vm1584 = vweird.f32 %v1578
        %vm1585 = vmor %vm1583, %vm1584
        %v1586 = vsel %vm1585, %v1578, %v1582
        %v1587 = vand.u32 2147483647, %v1480
        %vm1588 = vcmp.eq.f32.partialorder %v1587, 8.507059e+37
        %v1589 = vand.u32 %v1480, 2147483648
        %v1590 = vor.u32 1.1754944e-38, %v1589
        %v1591 = vsel %vm1588, %v1590, %v1586
        %v1592 = vmul.f32 1.0, %v1591
        %v1593 = vrcp.pop %v1481
        %v1594 = vmul.f32 %v1481, %v1593
        %v1595 = vsub.f32 1.0, %v1594
        %v1596 = vmul.f32 %v1593, %v1595
        %v1597 = vadd.f32 %v1593, %v1596
        %vm1598 = vweird.f32 %v1481
        %vm1599 = vweird.f32 %v1593
        %vm1600 = vmor %vm1598, %vm1599
        %v1601 = vsel %vm1600, %v1593, %v1597
        %v1602 = vand.u32 2147483647, %v1481
        %vm1603 = vcmp.eq.f32.partialorder %v1602, 8.507059e+37
        %v1604 = vand.u32 %v1481, 2147483648
        %v1605 = vor.u32 1.1754944e-38, %v1604
        %v1606 = vsel %vm1603, %v1605, %v1601
        %v1607 = vmul.f32 1.0, %v1606
        %v1608 = vrcp.pop %v1482
        %v1609 = vmul.f32 %v1482, %v1608
        %v1610 = vsub.f32 1.0, %v1609
        %v1611 = vmul.f32 %v1608, %v1610
        %v1612 = vadd.f32 %v1608, %v1611
        %vm1613 = vweird.f32 %v1482
        %vm1614 = vweird.f32 %v1608
        %vm1615 = vmor %vm1613, %vm1614
        %v1616 = vsel %vm1615, %v1608, %v1612
        %v1617 = vand.u32 2147483647, %v1482
        %vm1618 = vcmp.eq.f32.partialorder %v1617, 8.507059e+37
        %v1619 = vand.u32 %v1482, 2147483648
        %v1620 = vor.u32 1.1754944e-38, %v1619
        %v1621 = vsel %vm1618, %v1620, %v1616
        %v1622 = vmul.f32 1.0, %v1621
        %v1623 = vrcp.pop %v1483
        %v1624 = vmul.f32 %v1483, %v1623
        %v1625 = vsub.f32 1.0, %v1624
        %v1626 = vmul.f32 %v1623, %v1625
        %v1627 = vadd.f32 %v1623, %v1626
        %vm1628 = vweird.f32 %v1483
        %vm1629 = vweird.f32 %v1623
        %vm1630 = vmor %vm1628, %vm1629
        %v1631 = vsel %vm1630, %v1623, %v1627
        %v1632 = vand.u32 2147483647, %v1483
        %vm1633 = vcmp.eq.f32.partialorder %v1632, 8.507059e+37
        %v1634 = vand.u32 %v1483, 2147483648
        %v1635 = vor.u32 1.1754944e-38, %v1634
        %v1636 = vsel %vm1633, %v1635, %v1631
        %v1637 = vmul.f32 1.0, %v1636
        %v1638 = vrcp.pop %v1484
        %v1639 = vmul.f32 %v1484, %v1638
        %v1640 = vsub.f32 1.0, %v1639
        %v1641 = vmul.f32 %v1638, %v1640
        %v1642 = vadd.f32 %v1638, %v1641
        %vm1643 = vweird.f32 %v1484
        %vm1644 = vweird.f32 %v1638
        %vm1645 = vmor %vm1643, %vm1644
        %v1646 = vsel %vm1645, %v1638, %v1642
        %v1647 = vand.u32 2147483647, %v1484
        %vm1648 = vcmp.eq.f32.partialorder %v1647, 8.507059e+37
        %v1649 = vand.u32 %v1484, 2147483648
        %v1650 = vor.u32 1.1754944e-38, %v1649
        %v1651 = vsel %vm1648, %v1650, %v1646
        %v1652 = vmul.f32 1.0, %v1651
        %v1653 = vrcp.pop %v1485
        %v1654 = vmul.f32 %v1485, %v1653
        %v1655 = vsub.f32 1.0, %v1654
        %v1656 = vmul.f32 %v1653, %v1655
        %v1657 = vadd.f32 %v1653, %v1656
        %vm1658 = vweird.f32 %v1485
        %vm1659 = vweird.f32 %v1653
        %vm1660 = vmor %vm1658, %vm1659
        %v1661 = vsel %vm1660, %v1653, %v1657
        %v1662 = vand.u32 2147483647, %v1485
        %vm1663 = vcmp.eq.f32.partialorder %v1662, 8.507059e+37
        %v1664 = vand.u32 %v1485, 2147483648
        %v1665 = vor.u32 1.1754944e-38, %v1664
        %v1666 = vsel %vm1663, %v1665, %v1661
        %v1667 = vmul.f32 1.0, %v1666
        %v1668 = vrcp.pop %v1486
        %v1669 = vmul.f32 %v1486, %v1668
        %v1670 = vsub.f32 1.0, %v1669
        %v1671 = vmul.f32 %v1668, %v1670
        %v1672 = vadd.f32 %v1668, %v1671
        %vm1673 = vweird.f32 %v1486
        %vm1674 = vweird.f32 %v1668
        %vm1675 = vmor %vm1673, %vm1674
        %v1676 = vsel %vm1675, %v1668, %v1672
        %v1677 = vand.u32 2147483647, %v1486
        %vm1678 = vcmp.eq.f32.partialorder %v1677, 8.507059e+37
        %v1679 = vand.u32 %v1486, 2147483648
        %v1680 = vor.u32 1.1754944e-38, %v1679
        %v1681 = vsel %vm1678, %v1680, %v1676
        %v1682 = vmul.f32 1.0, %v1681
        %v1683 = vrcp.pop %v1487
        %v1684 = vmul.f32 %v1487, %v1683
        %v1685 = vsub.f32 1.0, %v1684
        %v1686 = vmul.f32 %v1683, %v1685
        %v1687 = vadd.f32 %v1683, %v1686
        %vm1688 = vweird.f32 %v1487
        %vm1689 = vweird.f32 %v1683
        %vm1690 = vmor %vm1688, %vm1689
        %v1691 = vsel %vm1690, %v1683, %v1687
        %v1692 = vand.u32 2147483647, %v1487
        %vm1693 = vcmp.eq.f32.partialorder %v1692, 8.507059e+37
        %v1694 = vand.u32 %v1487, 2147483648
        %v1695 = vor.u32 1.1754944e-38, %v1694
        %v1696 = vsel %vm1693, %v1695, %v1691
        %v1697 = vmul.f32 1.0, %v1696
        %v1698 = vmul.f32 %v1374, %v1502
        %v1699 = vmul.f32 %v1412, %v1517
        %v1700 = vmul.f32 %v1377, %v1532
        %v1701 = vmul.f32 %v1415, %v1547
        %v1702 = vmul.f32 %v1380, %v1562
        %v1703 = vmul.f32 %v1418, %v1577
        %v1704 = vmul.f32 %v1383, %v1592
        %v1705 = vmul.f32 %v1421, %v1607
        %v1706 = vmul.f32 %v1386, %v1622
        %v1707 = vmul.f32 %v1424, %v1637
        %v1708 = vmul.f32 %v1389, %v1652
        %v1709 = vmul.f32 %v1427, %v1667
        %v1710 = vmul.f32 %v1392, %v1682
        %v1711 = vmul.f32 %v1430, %v1697
        %v1712 = vld [vmem:[%s458] sm:$0xff]
        %v1713 = vld [vmem:[%s458 + $0x8] sm:$0xff]
        %v1714 = vld [vmem:[%s458 + $0x10] sm:$0xff]
        %v1715 = vld [vmem:[%s458 + $0x18] sm:$0xff]
        %v1716 = vld [vmem:[%s458 + $0x20] sm:$0xff]
        %v1717 = vld [vmem:[%s458 + $0x28] sm:$0xff]
        %v1718 = vld [vmem:[%s458 + $0x30] sm:$0xff]
        %v1719 = vld [vmem:[%s458 + $0x38] sm:$0xff]
        %v1720 = vld [vmem:[%s458 + $0x40] sm:$0xff]
        %v1721 = vld [vmem:[%s458 + $0x48] sm:$0xff]
        %v1722 = vld [vmem:[%s458 + $0x50] sm:$0xff]
        %v1723 = vld [vmem:[%s458 + $0x58] sm:$0xff]
        %v1724 = vld [vmem:[%s458 + $0x60] sm:$0xff]
        %v1725 = vld [vmem:[%s458 + $0x68] sm:$0xff]
        %v1726 = vld [vmem:[%s458 + $0x70] sm:$0xff]
        %v1727 = vld [vmem:[%s458 + $0x78] sm:$0xff]
        %v1728 = vld [vmem:[%s458 + $0x80] sm:$0xff]
        %v1729 = vld [vmem:[%s458 + $0x88] sm:$0xff]
        %v1730 = vld [vmem:[%s458 + $0x90] sm:$0xff]
        %v1731 = vld [vmem:[%s458 + $0x98] sm:$0xff]
        %v1732 = vld [vmem:[%s458 + $0xa0] sm:$0xff]
        %v1733 = vld [vmem:[%s458 + $0xa8] sm:$0xff]
        %v1734 = vld [vmem:[%s458 + $0xb0] sm:$0xff]
        %v1735 = vld [vmem:[%s458 + $0xb8] sm:$0xff]
        %v1736 = vld [vmem:[%s458 + $0xc0] sm:$0xff]
        %v1737 = vld [vmem:[%s458 + $0xc8] sm:$0xff]
        %v1738 = vld [vmem:[%s458 + $0xd0] sm:$0xff]
        %v1739 = vld [vmem:[%s458 + $0xd8] sm:$0xff]
        %v1740 = vld [vmem:[%s458 + $0xe0] sm:$0xff]
        %v1741 = vld [vmem:[%s458 + $0xe8] sm:$0xff]
        %v1742 = vld [vmem:[%s458 + $0xf0] sm:$0xff]
        %v1743 = vld [vmem:[%s458 + $0xf8] sm:$0xff]
        %v1744 = vld [vmem:[%s458 + $0x100] sm:$0xff]
        %v1745 = vld [vmem:[%s458 + $0x108] sm:$0xff]
        %v1746 = vld [vmem:[%s458 + $0x110] sm:$0xff]
        %v1747 = vld [vmem:[%s458 + $0x118] sm:$0xff]
        %v1748 = vld [vmem:[%s458 + $0x120] sm:$0xff]
        %v1749 = vld [vmem:[%s458 + $0x128] sm:$0xff]
        %v1750 = vld [vmem:[%s458 + $0x130] sm:$0xff]
        %v1751 = vld [vmem:[%s458 + $0x138] sm:$0xff]
        %v1752 = vld [vmem:[%s458 + $0x140] sm:$0xff]
        %v1753 = vld [vmem:[%s458 + $0x148] sm:$0xff]
        %v1754 = vld [vmem:[%s458 + $0x150] sm:$0xff]
        %v1755 = vld [vmem:[%s458 + $0x158] sm:$0xff]
        %v1756 = vld [vmem:[%s458 + $0x160] sm:$0xff]
        %v1757 = vld [vmem:[%s458 + $0x168] sm:$0xff]
        %v1758 = vld [vmem:[%s458 + $0x170] sm:$0xff]
        %v1759 = vld [vmem:[%s458 + $0x178] sm:$0xff]
        %v1760 = vld [vmem:[%s458 + $0x180] sm:$0xff]
        %v1761 = vld [vmem:[%s458 + $0x188] sm:$0xff]
        %v1762 = vld [vmem:[%s458 + $0x190] sm:$0xff]
        %v1763 = vld [vmem:[%s458 + $0x198] sm:$0xff]
        %v1764 = vld [vmem:[%s458 + $0x1a0] sm:$0xff]
        %v1765 = vld [vmem:[%s458 + $0x1a8] sm:$0xff]
        %v1766 = vld [vmem:[%s458 + $0x1b0] sm:$0xff]
        %v1767 = vld [vmem:[%s458 + $0x1b8] sm:$0xff]
        %v1768 = vld [vmem:[%s458 + $0x1c0] sm:$0xff]
        %v1769 = vld [vmem:[%s458 + $0x1c8] sm:$0xff]
        %v1770 = vld [vmem:[%s458 + $0x1d0] sm:$0xff]
        %v1771 = vld [vmem:[%s458 + $0x1d8] sm:$0xff]
        %v1772 = vld [vmem:[%s458 + $0x1e0] sm:$0xff]
        %v1773 = vld [vmem:[%s458 + $0x1e8] sm:$0xff]
        %v1774 = vld [vmem:[%s458 + $0x1f0] sm:$0xff]
        %v1775 = vld [vmem:[%s458 + $0x1f8] sm:$0xff]
        %v1776 = vperm.slane %v1046, 1
        %v1777 = vperm.slane %v1046, 5
        %v1780 = vperm.slane %v1776, 1
        %v1781 = vperm.slane %v1777, 1
        %1782 = vmatpush.msra.mxu0 %v1742
        %1783 = vmatpush.msra.mxu0 %v1740
        %1784 = vmatpush.msra.mxu0 %v1738
        %1785 = vmatpush.msra.mxu0 %v1736
        %1786 = vmatpush.msra.mxu0 %v1734
        %1787 = vmatpush.msra.mxu0 %v1732
        %1788 = vmatpush.msra.mxu0 %v1730
        %1789 = vmatpush.msra.mxu0 %v1728
        %1790 = vmatpush.msra.mxu0 %v1726
        %1791 = vmatpush.msra.mxu0 %v1724
        %1792 = vmatpush.msra.mxu0 %v1722
        %1793 = vmatpush.msra.mxu0 %v1720
        %1794 = vmatpush.msra.mxu0 %v1718
        %1795 = vmatpush.msra.mxu0 %v1716
        %1796 = vmatpush.msra.mxu0 %v1714
        %1797 = vmatpush.msra.mxu0 %v1712
        %1798 = vmatmul.f32.gmra.mxu0 %v1698
        %v1799 = vpop.f32.mrf.mxu0
        %v1800 = vadd.f32 %v1780, %v1799
        %1801 = vmatmul.f32.gmra.mxu0 %v1700
        %v1802 = vpop.f32.mrf.mxu0
        %v1803 = vadd.f32 %v1780, %v1802
        %1804 = vmatmul.f32.gmra.mxu0 %v1702
        %v1805 = vpop.f32.mrf.mxu0
        %v1806 = vadd.f32 %v1780, %v1805
        %1807 = vmatmul.f32.gmra.mxu0 %v1704
        %v1808 = vpop.f32.mrf.mxu0
        %v1809 = vadd.f32 %v1780, %v1808
        %1810 = vmatmul.f32.gmra.mxu0 %v1706
        %v1811 = vpop.f32.mrf.mxu0
        %v1812 = vadd.f32 %v1780, %v1811
        %1813 = vmatmul.f32.gmra.mxu0 %v1708
        %v1814 = vpop.f32.mrf.mxu0
        %v1815 = vadd.f32 %v1780, %v1814
        %1816 = vmatmul.f32.gmra.mxu0 %v1710
        %v1817 = vpop.f32.mrf.mxu0
        %v1818 = vadd.f32 %v1780, %v1817
        %1819 = vdwg.mxu0
        %1820 = vmatpush.msra.mxu0 %v1774
        %1821 = vmatpush.msra.mxu0 %v1772
        %1822 = vmatpush.msra.mxu0 %v1770
        %1823 = vmatpush.msra.mxu0 %v1768
        %1824 = vmatpush.msra.mxu0 %v1766
        %1825 = vmatpush.msra.mxu0 %v1764
        %1826 = vmatpush.msra.mxu0 %v1762
        %1827 = vmatpush.msra.mxu0 %v1760
        %1828 = vmatpush.msra.mxu0 %v1758
        %1829 = vmatpush.msra.mxu0 %v1756
        %1830 = vmatpush.msra.mxu0 %v1754
        %1831 = vmatpush.msra.mxu0 %v1752
        %1832 = vmatpush.msra.mxu0 %v1750
        %1833 = vmatpush.msra.mxu0 %v1748
        %1834 = vmatpush.msra.mxu0 %v1746
        %1835 = vmatpush.msra.mxu0 %v1744
        %1836 = vmatmul.f32.gmra.mxu0 %v1699
        %v1837 = vpop.f32.mrf.mxu0
        %v1838 = vadd.f32 %v1800, %v1837
        %1839 = vmatmul.f32.gmra.mxu0 %v1701
        %v1840 = vpop.f32.mrf.mxu0
        %v1841 = vadd.f32 %v1803, %v1840
        %1842 = vmatmul.f32.gmra.mxu0 %v1703
        %v1843 = vpop.f32.mrf.mxu0
        %v1844 = vadd.f32 %v1806, %v1843
        %1845 = vmatmul.f32.gmra.mxu0 %v1705
        %v1846 = vpop.f32.mrf.mxu0
        %v1847 = vadd.f32 %v1809, %v1846
        %1848 = vmatmul.f32.gmra.mxu0 %v1707
        %v1849 = vpop.f32.mrf.mxu0
        %v1850 = vadd.f32 %v1812, %v1849
        %1851 = vmatmul.f32.gmra.mxu0 %v1709
        %v1852 = vpop.f32.mrf.mxu0
        %v1853 = vadd.f32 %v1815, %v1852
        %1854 = vmatmul.f32.gmra.mxu0 %v1711
        %v1855 = vpop.f32.mrf.mxu0
        %v1856 = vadd.f32 %v1818, %v1855
        %1857 = vdwg.mxu0
        %1858 = vmatpush.msra.mxu0 %v1743
        %1859 = vmatpush.msra.mxu0 %v1741
        %1860 = vmatpush.msra.mxu0 %v1739
        %1861 = vmatpush.msra.mxu0 %v1737
        %1862 = vmatpush.msra.mxu0 %v1735
        %1863 = vmatpush.msra.mxu0 %v1733
        %1864 = vmatpush.msra.mxu0 %v1731
        %1865 = vmatpush.msra.mxu0 %v1729
        %1866 = vmatpush.msra.mxu0 %v1727
        %1867 = vmatpush.msra.mxu0 %v1725
        %1868 = vmatpush.msra.mxu0 %v1723
        %1869 = vmatpush.msra.mxu0 %v1721
        %1870 = vmatpush.msra.mxu0 %v1719
        %1871 = vmatpush.msra.mxu0 %v1717
        %1872 = vmatpush.msra.mxu0 %v1715
        %1873 = vmatpush.msra.mxu0 %v1713
        %1874 = vmatmul.f32.gmra.mxu0 %v1698
        %v1875 = vpop.f32.mrf.mxu0
        %v1876 = vadd.f32 %v1781, %v1875
        %1877 = vmatmul.f32.gmra.mxu0 %v1700
        %v1878 = vpop.f32.mrf.mxu0
        %v1879 = vadd.f32 %v1781, %v1878
        %1880 = vmatmul.f32.gmra.mxu0 %v1702
        %v1881 = vpop.f32.mrf.mxu0
        %v1882 = vadd.f32 %v1781, %v1881
        %1883 = vmatmul.f32.gmra.mxu0 %v1704
        %v1884 = vpop.f32.mrf.mxu0
        %v1885 = vadd.f32 %v1781, %v1884
        %1886 = vmatmul.f32.gmra.mxu0 %v1706
        %v1887 = vpop.f32.mrf.mxu0
        %v1888 = vadd.f32 %v1781, %v1887
        %1889 = vmatmul.f32.gmra.mxu0 %v1708
        %v1890 = vpop.f32.mrf.mxu0
        %v1891 = vadd.f32 %v1781, %v1890
        %1892 = vmatmul.f32.gmra.mxu0 %v1710
        %v1893 = vpop.f32.mrf.mxu0
        %v1894 = vadd.f32 %v1781, %v1893
        %1895 = vdwg.mxu0
        %1896 = vmatpush.msra.mxu0 %v1775
        %1897 = vmatpush.msra.mxu0 %v1773
        %1898 = vmatpush.msra.mxu0 %v1771
        %1899 = vmatpush.msra.mxu0 %v1769
        %1900 = vmatpush.msra.mxu0 %v1767
        %1901 = vmatpush.msra.mxu0 %v1765
        %1902 = vmatpush.msra.mxu0 %v1763
        %1903 = vmatpush.msra.mxu0 %v1761
        %1904 = vmatpush.msra.mxu0 %v1759
        %1905 = vmatpush.msra.mxu0 %v1757
        %1906 = vmatpush.msra.mxu0 %v1755
        %1907 = vmatpush.msra.mxu0 %v1753
        %1908 = vmatpush.msra.mxu0 %v1751
        %1909 = vmatpush.msra.mxu0 %v1749
        %1910 = vmatpush.msra.mxu0 %v1747
        %1911 = vmatpush.msra.mxu0 %v1745
        %1912 = vmatmul.f32.gmra.mxu0 %v1699
        %v1913 = vpop.f32.mrf.mxu0
        %v1914 = vadd.f32 %v1876, %v1913
        %1915 = vmatmul.f32.gmra.mxu0 %v1701
        %v1916 = vpop.f32.mrf.mxu0
        %v1917 = vadd.f32 %v1879, %v1916
        %1918 = vmatmul.f32.gmra.mxu0 %v1703
        %v1919 = vpop.f32.mrf.mxu0
        %v1920 = vadd.f32 %v1882, %v1919
        %1921 = vmatmul.f32.gmra.mxu0 %v1705
        %v1922 = vpop.f32.mrf.mxu0
        %v1923 = vadd.f32 %v1885, %v1922
        %1924 = vmatmul.f32.gmra.mxu0 %v1707
        %v1925 = vpop.f32.mrf.mxu0
        %v1926 = vadd.f32 %v1888, %v1925
        %1927 = vmatmul.f32.gmra.mxu0 %v1709
        %v1928 = vpop.f32.mrf.mxu0
        %v1929 = vadd.f32 %v1891, %v1928
        %1930 = vmatmul.f32.gmra.mxu0 %v1711
        %v1931 = vpop.f32.mrf.mxu0
        %v1932 = vadd.f32 %v1894, %v1931
        %1933 = vdwg.mxu0
        %v1934 = vxor.u32 %v1838, 2147483648
        %v1935 = vxor.u32 %v1841, 2147483648
        %v1936 = vxor.u32 %v1844, 2147483648
        %v1937 = vxor.u32 %v1847, 2147483648
        %v1938 = vxor.u32 %v1850, 2147483648
        %v1939 = vxor.u32 %v1853, 2147483648
        %v1940 = vxor.u32 %v1856, 2147483648
        %v1941 = vmul.f32 %v1934, 1.442695
        %v1942 = vpow.pop %v1941
        %v1943 = vmul.f32 %v1935, 1.442695
        %v1944 = vpow.pop %v1943
        %v1945 = vmul.f32 %v1936, 1.442695
        %v1946 = vpow.pop %v1945
        %v1947 = vmul.f32 %v1937, 1.442695
        %v1948 = vpow.pop %v1947
        %v1949 = vmul.f32 %v1938, 1.442695
        %v1950 = vpow.pop %v1949
        %v1951 = vmul.f32 %v1939, 1.442695
        %v1952 = vpow.pop %v1951
        %v1953 = vmul.f32 %v1940, 1.442695
        %v1954 = vpow.pop %v1953
        %v1955 = vadd.f32 %v1942, 1.0
        %v1956 = vadd.f32 %v1944, 1.0
        %v1957 = vadd.f32 %v1946, 1.0
        %v1958 = vadd.f32 %v1948, 1.0
        %v1959 = vadd.f32 %v1950, 1.0
        %v1960 = vadd.f32 %v1952, 1.0
        %v1961 = vadd.f32 %v1954, 1.0
        %v1962 = vrcp.pop %v1955
        %v1963 = vmul.f32 %v1955, %v1962
        %v1964 = vsub.f32 1.0, %v1963
        %v1965 = vmul.f32 %v1962, %v1964
        %v1966 = vadd.f32 %v1962, %v1965
        %vm1967 = vweird.f32 %v1955
        %vm1968 = vweird.f32 %v1962
        %vm1969 = vmor %vm1967, %vm1968
        %v1970 = vsel %vm1969, %v1962, %v1966
        %v1971 = vand.u32 2147483647, %v1955
        %vm1972 = vcmp.eq.f32.partialorder %v1971, 8.507059e+37
        %v1973 = vand.u32 %v1955, 2147483648
        %v1974 = vor.u32 1.1754944e-38, %v1973
        %v1975 = vsel %vm1972, %v1974, %v1970
        %v1976 = vmul.f32 1.0, %v1975
        %v1977 = vrcp.pop %v1956
        %v1978 = vmul.f32 %v1956, %v1977
        %v1979 = vsub.f32 1.0, %v1978
        %v1980 = vmul.f32 %v1977, %v1979
        %v1981 = vadd.f32 %v1977, %v1980
        %vm1982 = vweird.f32 %v1956
        %vm1983 = vweird.f32 %v1977
        %vm1984 = vmor %vm1982, %vm1983
        %v1985 = vsel %vm1984, %v1977, %v1981
        %v1986 = vand.u32 2147483647, %v1956
        %vm1987 = vcmp.eq.f32.partialorder %v1986, 8.507059e+37
        %v1988 = vand.u32 %v1956, 2147483648
        %v1989 = vor.u32 1.1754944e-38, %v1988
        %v1990 = vsel %vm1987, %v1989, %v1985
        %v1991 = vmul.f32 1.0, %v1990
        %v1992 = vrcp.pop %v1957
        %v1993 = vmul.f32 %v1957, %v1992
        %v1994 = vsub.f32 1.0, %v1993
        %v1995 = vmul.f32 %v1992, %v1994
        %v1996 = vadd.f32 %v1992, %v1995
        %vm1997 = vweird.f32 %v1957
        %vm1998 = vweird.f32 %v1992
        %vm1999 = vmor %vm1997, %vm1998
        %v2000 = vsel %vm1999, %v1992, %v1996
        %v2001 = vand.u32 2147483647, %v1957
        %vm2002 = vcmp.eq.f32.partialorder %v2001, 8.507059e+37
        %v2003 = vand.u32 %v1957, 2147483648
        %v2004 = vor.u32 1.1754944e-38, %v2003
        %v2005 = vsel %vm2002, %v2004, %v2000
        %v2006 = vmul.f32 1.0, %v2005
        %v2007 = vrcp.pop %v1958
        %v2008 = vmul.f32 %v1958, %v2007
        %v2009 = vsub.f32 1.0, %v2008
        %v2010 = vmul.f32 %v2007, %v2009
        %v2011 = vadd.f32 %v2007, %v2010
        %vm2012 = vweird.f32 %v1958
        %vm2013 = vweird.f32 %v2007
        %vm2014 = vmor %vm2012, %vm2013
        %v2015 = vsel %vm2014, %v2007, %v2011
        %v2016 = vand.u32 2147483647, %v1958
        %vm2017 = vcmp.eq.f32.partialorder %v2016, 8.507059e+37
        %v2018 = vand.u32 %v1958, 2147483648
        %v2019 = vor.u32 1.1754944e-38, %v2018
        %v2020 = vsel %vm2017, %v2019, %v2015
        %v2021 = vmul.f32 1.0, %v2020
        %v2022 = vrcp.pop %v1959
        %v2023 = vmul.f32 %v1959, %v2022
        %v2024 = vsub.f32 1.0, %v2023
        %v2025 = vmul.f32 %v2022, %v2024
        %v2026 = vadd.f32 %v2022, %v2025
        %vm2027 = vweird.f32 %v1959
        %vm2028 = vweird.f32 %v2022
        %vm2029 = vmor %vm2027, %vm2028
        %v2030 = vsel %vm2029, %v2022, %v2026
        %v2031 = vand.u32 2147483647, %v1959
        %vm2032 = vcmp.eq.f32.partialorder %v2031, 8.507059e+37
        %v2033 = vand.u32 %v1959, 2147483648
        %v2034 = vor.u32 1.1754944e-38, %v2033
        %v2035 = vsel %vm2032, %v2034, %v2030
        %v2036 = vmul.f32 1.0, %v2035
        %v2037 = vrcp.pop %v1960
        %v2038 = vmul.f32 %v1960, %v2037
        %v2039 = vsub.f32 1.0, %v2038
        %v2040 = vmul.f32 %v2037, %v2039
        %v2041 = vadd.f32 %v2037, %v2040
        %vm2042 = vweird.f32 %v1960
        %vm2043 = vweird.f32 %v2037
        %vm2044 = vmor %vm2042, %vm2043
        %v2045 = vsel %vm2044, %v2037, %v2041
        %v2046 = vand.u32 2147483647, %v1960
        %vm2047 = vcmp.eq.f32.partialorder %v2046, 8.507059e+37
        %v2048 = vand.u32 %v1960, 2147483648
        %v2049 = vor.u32 1.1754944e-38, %v2048
        %v2050 = vsel %vm2047, %v2049, %v2045
        %v2051 = vmul.f32 1.0, %v2050
        %v2052 = vrcp.pop %v1961
        %v2053 = vmul.f32 %v1961, %v2052
        %v2054 = vsub.f32 1.0, %v2053
        %v2055 = vmul.f32 %v2052, %v2054
        %v2056 = vadd.f32 %v2052, %v2055
        %vm2057 = vweird.f32 %v1961
        %vm2058 = vweird.f32 %v2052
        %vm2059 = vmor %vm2057, %vm2058
        %v2060 = vsel %vm2059, %v2052, %v2056
        %v2061 = vand.u32 2147483647, %v1961
        %vm2062 = vcmp.eq.f32.partialorder %v2061, 8.507059e+37
        %v2063 = vand.u32 %v1961, 2147483648
        %v2064 = vor.u32 1.1754944e-38, %v2063
        %v2065 = vsel %vm2062, %v2064, %v2060
        %v2066 = vmul.f32 1.0, %v2065
        %v2067 = vmul.f32 %v1976, %v1914
        %v2068 = vmul.f32 %v1991, %v1917
        %v2069 = vmul.f32 %v2006, %v1920
        %v2070 = vmul.f32 %v2021, %v1923
        %v2071 = vmul.f32 %v2036, %v1926
        %v2072 = vmul.f32 %v2051, %v1929
        %v2073 = vmul.f32 %v2066, %v1932
        %v2074 = vld [vmem:[#allocation5] sm:$0xff]
        %v2075 = vld [vmem:[#allocation5 + $0x8] sm:$0xff]
        %vm2076 = vcmask 457728
        %v2078 = vsel %vm2076, %v2074, 0
        %v2081 = vsel %vm2076, %v2075, 0
        %2083 = vmatpush.msra.mxu0 0.0
        %2084 = vmatpush.msra.mxu0 0.0
        %2085 = vmatpush.msra.mxu0 0.0
        %2086 = vmatpush.msra.mxu0 0.0
        %2087 = vmatpush.msra.mxu0 0.0
        %2088 = vmatpush.msra.mxu0 0.0
        %2089 = vmatpush.msra.mxu0 0.0
        %2090 = vmatpush.msra.mxu0 0.0
        %2091 = vmatpush.msra.mxu0 0.0
        %2092 = vmatpush.msra.mxu0 %v2073
        %2093 = vmatpush.msra.mxu0 %v2072
        %2094 = vmatpush.msra.mxu0 %v2071
        %2095 = vmatpush.msra.mxu0 %v2070
        %2096 = vmatpush.msra.mxu0 %v2069
        %2097 = vmatpush.msra.mxu0 %v2068
        %2098 = vmatpush.msra.mxu0 %v2067
        %2099 = vmatmul.f32.gmra.mxu0 %v2078
        %v2100 = vpop.f32.mrf.mxu0
        %v2101 = vadd.f32 0.0, %v2100
        %2102 = vmatmul.f32.gmra.mxu0 %v2081
        %v2103 = vpop.f32.mrf.mxu0
        %v2104 = vadd.f32 0.0, %v2103
        %2105 = vdwg.mxu0
        %v2106 = vadd.f32 %v1047, %v2101
        %v2107 = vadd.f32 %v1048, %v2104
        %v2108 = vperm.slane %v1046, 2
        %v2109 = vadd.f32 %v2106, %v2108
        %v2110 = vadd.f32 %v2107, %v2108
        %v2111 = vmax.f32 %v2109, 0.0
        %v2112 = vmax.f32 %v2110, 0.0
        %2113 = vst [vmem:[#allocation2] sm:$0xff] %v2111
        %2114 = vst [vmem:[#allocation2 + $0x8] sm:$0xff] %v2112
        %p2115 = scmp.eq.s32.totalorder %s30, 2
        // Predicated region
        $region85: #{tpu_custom_call.1} parent=63 // pred_check
          %p2116 = pneg %p2115
        $region86: #{tpu_custom_call.1} parent=63 // pred_check_branch
          %2118 = sbr.rel (%p2116) target = $region88
        $region87: #{tpu_custom_call.1} parent=63 // pred_region
          %v2119 = vld [vmem:[%s6 + $0x7] sm:$0x1]
          %v2120 = vld [vmem:[%s6 + $0x8] sm:$0x1]
          %v2121 = vld [vmem:[%s4 + $0x1] sm:$0x1]
          %v2122 = vlaneseq
          %v2123 = vshrl.u32 %v2122, 7
          %v2124 = vperm.slane %v2121, 0
          %vm2125 = vcmp.eq.s32.totalorder %v2123, %v2124
          %v2126 = vsel %vm2125, 1, 0
          %v2127 = vcvt.s32.f32 %v2126
          %vm2128 = vcmask 123904
          %v2129 = vsel %vm2128, %v2127, 0.0
          %2130 = vadd.xlane.f32.xlu0 %v2129
          %v2131 = vpop.xlane.xlu0 %2130
          %v2132 = vld [vmem:[#allocation2] sm:$0xff]
          %v2133 = vld [vmem:[#allocation2 + $0x8] sm:$0xff]
          %vm2134 = vcmask 130048
          %v2136 = vsel %vm2134, %v2127, 0
          %2138 = vmatpush.msra.mxu0 0.0
          %2139 = vmatpush.msra.mxu0 0.0
          %2140 = vmatpush.msra.mxu0 0.0
          %2141 = vmatpush.msra.mxu0 0.0
          %2142 = vmatpush.msra.mxu0 0.0
          %2143 = vmatpush.msra.mxu0 0.0
          %2144 = vmatpush.msra.mxu0 0.0
          %2145 = vmatpush.msra.mxu0 0.0
          %2146 = vmatpush.msra.mxu0 0.0
          %2147 = vmatpush.msra.mxu0 0.0
          %2148 = vmatpush.msra.mxu0 0.0
          %2149 = vmatpush.msra.mxu0 0.0
          %2150 = vmatpush.msra.mxu0 0.0
          %2151 = vmatpush.msra.mxu0 0.0
          %2152 = vmatpush.msra.mxu0 %v2133
          %2153 = vmatpush.msra.mxu0 %v2132
          %2154 = vmatmul.f32.gmra.mxu0 %v2136
          %v2155 = vpop.f32.mrf.mxu0
          %v2156 = vadd.f32 0.0, %v2155
          %2157 = vdwg.mxu0
          %v2158 = vmax.f32 %v2131, 1.0
          %v2159 = vrcp.pop %v2158
          %v2160 = vmul.f32 %v2158, %v2159
          %v2161 = vsub.f32 1.0, %v2160
          %v2162 = vmul.f32 %v2159, %v2161
          %v2163 = vadd.f32 %v2159, %v2162
          %vm2164 = vweird.f32 %v2158
          %vm2165 = vweird.f32 %v2159
          %vm2166 = vmor %vm2164, %vm2165
          %v2167 = vsel %vm2166, %v2159, %v2163
          %v2168 = vand.u32 2147483647, %v2158
          %vm2169 = vcmp.eq.f32.partialorder %v2168, 8.507059e+37
          %v2170 = vand.u32 %v2158, 2147483648
          %v2171 = vor.u32 1.1754944e-38, %v2170
          %v2172 = vsel %vm2169, %v2171, %v2167
          %v2173 = vmul.f32 %v2156, %v2172
          %s2174 = scalar_lea.vmem [#allocation6], 384
          %v2175 = vld [vmem:[%s2174] sm:$0xff]
          %v2176 = vld [vmem:[%s2174 + $0x8] sm:$0xff]
          %v2177 = vld [vmem:[%s2174 + $0x10] sm:$0xff]
          %v2178 = vld [vmem:[%s2174 + $0x18] sm:$0xff]
          %v2179 = vld [vmem:[%s2174 + $0x20] sm:$0xff]
          %v2180 = vld [vmem:[%s2174 + $0x28] sm:$0xff]
          %v2181 = vld [vmem:[%s2174 + $0x30] sm:$0xff]
          %v2182 = vld [vmem:[%s2174 + $0x38] sm:$0xff]
          %v2183 = vld [vmem:[%s2174 + $0x40] sm:$0xff]
          %v2184 = vld [vmem:[%s2174 + $0x48] sm:$0xff]
          %v2185 = vld [vmem:[%s2174 + $0x50] sm:$0xff]
          %v2186 = vld [vmem:[%s2174 + $0x58] sm:$0xff]
          %v2187 = vld [vmem:[%s2174 + $0x60] sm:$0xff]
          %v2188 = vld [vmem:[%s2174 + $0x68] sm:$0xff]
          %v2189 = vld [vmem:[%s2174 + $0x70] sm:$0xff]
          %v2190 = vld [vmem:[%s2174 + $0x78] sm:$0xff]
          %v2191 = vperm.slane %v2119, 0
          %2192 = vmatpush.msra.mxu0 %v2190
          %2193 = vmatpush.msra.mxu0 %v2189
          %2194 = vmatpush.msra.mxu0 %v2188
          %2195 = vmatpush.msra.mxu0 %v2187
          %2196 = vmatpush.msra.mxu0 %v2186
          %2197 = vmatpush.msra.mxu0 %v2185
          %2198 = vmatpush.msra.mxu0 %v2184
          %2199 = vmatpush.msra.mxu0 %v2183
          %2200 = vmatpush.msra.mxu0 %v2182
          %2201 = vmatpush.msra.mxu0 %v2181
          %2202 = vmatpush.msra.mxu0 %v2180
          %2203 = vmatpush.msra.mxu0 %v2179
          %2204 = vmatpush.msra.mxu0 %v2178
          %2205 = vmatpush.msra.mxu0 %v2177
          %2206 = vmatpush.msra.mxu0 %v2176
          %2207 = vmatpush.msra.mxu0 %v2175
          %2208 = vmatmul.f32.gmra.mxu0 %v2173
          %v2209 = vpop.f32.mrf.mxu0
          %v2210 = vadd.f32 %v2191, %v2209
          %2211 = vdwg.mxu0
          %v2212 = vmax.f32 %v2210, 0.0
          %vm2213 = vcmp.ne.f32.partialorder %v2210, %v2210
          %v2214 = vadd.f32 %v2210, 0.0
          %v2215 = vand.u32 2147483647, %v2210
          %v2216 = vsub.f32 0.0, %v2215
          %v2217 = vmul.f32 %v2216, 1.442695
          %v2218 = vpow.pop %v2217
          %v2219 = vadd.f32 %v2218, 1.0
          %v2220 = vlog2.pop %v2219
          %v2221 = vmul.f32 %v2220, 0.6931472
          %v2222 = vmul.f32 -0.5, %v2218
          %v2223 = vadd.f32 %v2222, 1.0
          %v2224 = vmul.f32 %v2223, %v2218
          %v2225 = vand.u32 2147483647, %v2218
          %vm2226 = vcmp.lt.f32.partialorder %v2225, 0.0004427343
          %v2227 = vsel %vm2226, %v2224, %v2221
          %v2228 = vadd.f32 %v2212, %v2227
          %v2229 = vsel %vm2213, %v2214, %v2228
          %v2230 = vsub.f32 %v2229, 0.6931472
          %s2231 = scalar_lea.vmem [#allocation6], 512
          %v2232 = vld [vmem:[%s2231] sm:$0xff]
          %v2233 = vld [vmem:[%s2231 + $0x8] sm:$0xff]
          %v2234 = vld [vmem:[%s2231 + $0x10] sm:$0xff]
          %v2235 = vld [vmem:[%s2231 + $0x18] sm:$0xff]
          %v2236 = vld [vmem:[%s2231 + $0x20] sm:$0xff]
          %v2237 = vld [vmem:[%s2231 + $0x28] sm:$0xff]
          %v2238 = vld [vmem:[%s2231 + $0x30] sm:$0xff]
          %v2239 = vld [vmem:[%s2231 + $0x38] sm:$0xff]
          %v2240 = vld [vmem:[%s2231 + $0x40] sm:$0xff]
          %v2241 = vld [vmem:[%s2231 + $0x48] sm:$0xff]
          %v2242 = vld [vmem:[%s2231 + $0x50] sm:$0xff]
          %v2243 = vld [vmem:[%s2231 + $0x58] sm:$0xff]
          %v2244 = vld [vmem:[%s2231 + $0x60] sm:$0xff]
          %v2245 = vld [vmem:[%s2231 + $0x68] sm:$0xff]
          %v2246 = vld [vmem:[%s2231 + $0x70] sm:$0xff]
          %v2247 = vld [vmem:[%s2231 + $0x78] sm:$0xff]
          %v2248 = vperm.slane %v2120, 0
          %2249 = vmatpush.msra.mxu0 %v2247
          %2250 = vmatpush.msra.mxu0 %v2246
          %2251 = vmatpush.msra.mxu0 %v2245
          %2252 = vmatpush.msra.mxu0 %v2244
          %2253 = vmatpush.msra.mxu0 %v2243
          %2254 = vmatpush.msra.mxu0 %v2242
          %2255 = vmatpush.msra.mxu0 %v2241
          %2256 = vmatpush.msra.mxu0 %v2240
          %2257 = vmatpush.msra.mxu0 %v2239
          %2258 = vmatpush.msra.mxu0 %v2238
          %2259 = vmatpush.msra.mxu0 %v2237
          %2260 = vmatpush.msra.mxu0 %v2236
          %2261 = vmatpush.msra.mxu0 %v2235
          %2262 = vmatpush.msra.mxu0 %v2234
          %2263 = vmatpush.msra.mxu0 %v2233
          %2264 = vmatpush.msra.mxu0 %v2232
          %2265 = vmatmul.f32.gmra.mxu0 %v2230
          %v2266 = vpop.f32.mrf.mxu0
          %v2267 = vadd.f32 %v2248, %v2266
          %2268 = vdwg.mxu0
          %2269 = vst [vmem:[#allocation14] sm:$0x3] %v2267
        $region88: #{tpu_custom_call.1} parent=63 // pred_fallthru
          _
        // Predicated region
        $region89: #{tpu_custom_call.1} parent=63 // pred_check
          %p2270 = pneg %p294
        $region90: #{tpu_custom_call.1} parent=63 // pred_check_branch
          %2272 = sbr.rel (%p2270) target = $region92
        $region91: #{tpu_custom_call.1} parent=63 // pred_region
          %2274 = vsyncadd [#allocation8], 0
          %s2276 = sshll.u32 [#allocation14], 4
          %s2277 = int_to_ptr.vmem [resolvable:$true] %s2276
          %s2278 = sshll.u32 %s11, 4
          %s2279 = int_to_ptr.hbm [resolvable:$true] %s2278
          %2281 = dma.vmem_to_hbm [thread:$0]  %s2277, 32, %s2279, [#allocation8]
        $region92: #{tpu_custom_call.1} parent=63 // pred_fallthru
          _
        // Predicated region
        $region93: #{tpu_custom_call.1} parent=63 // pred_check
          %p2282 = pneg %p294
        $region94: #{tpu_custom_call.1} parent=63 // pred_check_branch
          %2284 = sbr.rel (%p2282) target = $region96
        $region95: #{tpu_custom_call.1} parent=63 // pred_region
          %2286 = dma.done [#allocation8], 32
        $region96: #{tpu_custom_call.1} parent=63 // pred_fallthru
          _
      $region64: #{tpu_custom_call.1} parent=5 // pred_fallthru
        _
      %p2287 = scmp.le.s32.totalorder 2, %s25
      // Predicated region
      $region97: #{tpu_custom_call.1} parent=5 // pred_check
        %p2288 = pneg %p2287
      $region98: #{tpu_custom_call.1} parent=5 // pred_check_branch
        %2290 = sbr.rel (%p2288) target = $region100
      $region99: #{tpu_custom_call.1} parent=5 // pred_region
        %s2291 = ssub.s32 %s25, 2
      $region100: #{tpu_custom_call.1} parent=5 // pred_fallthru
        _
    $region6: #{tpu_custom_call.1} parent=1 // loop_footer
      %s29 = sadd.s32 1, %s25
    $region7: #{tpu_custom_call.1} parent=1 // loop_footer_branch
      %24 = sbr.rel target = $region3
    $region8: #{tpu_custom_call.1} parent=1 // loop_exit
      _
    %2292 = vsyncpa [#allocation7], 1
    %s2293 = scalar_lea.sflag [#allocation7], 1
    %2294 = vsyncpa %s2293, 1
    %2295 = vsyncpa [#allocation10], 1
    %s2296 = scalar_lea.sflag [#allocation10], 1
    %2297 = vsyncpa %s2296, 1
    %2298 = vsyncpa [#allocation13], 1
    %s2299 = scalar_lea.sflag [#allocation13], 1
    %2300 = vsyncpa %s2299, 1
    %2301 = vsyncpa [#allocation8], 1
    %s2302 = scalar_lea.sflag [#allocation8], 1
    %2303 = vsyncpa %s2302, 1

</llo_original>
